<compile_context>
chip_gen: v6e
topology: v6e:2x2x1
jax: 0.10.0
libtpu: 0.0.40
codegen_flags: <defaults>
</compile_context>

<pallas_src>
import jax
import jax.numpy as jnp
from jax.experimental import pallas as pl
from jax.experimental.pallas import tpu as pltpu

TN_DEFAULT = 4096  # points per grid step (bf16 streamed inputs)


def _round_up(x, m):
    return ((x + m - 1) // m) * m


def _fused_refine_kernel(
    x_ref, s1_ref, s2_ref, s3_ref, s4_ref,
    w1a_ref, w1b_ref, sh1_ref,
    w2a_ref, w2b_ref, sh2_ref,
    w3a_ref, w3b_ref, sh3_ref,
    w4a_ref, w4b_ref, sh4_ref,
    w5_ref, b5_ref,
    o_ref,
):
    def stage(h_bf16, skip_ref, wa_ref, wb_ref, shift_ref):
        # cat(h, skip) @ W == h @ W[:C1] + skip @ W[C1:]; BN scale pre-folded into the
        # bf16 weights, Linear bias + BN shift folded into the f32 `shift`.
        acc = jnp.dot(h_bf16, wa_ref[...], preferred_element_type=jnp.float32)
        acc = acc + jnp.dot(skip_ref[...], wb_ref[...],
                            preferred_element_type=jnp.float32)
        h = jnp.maximum(acc + shift_ref[...], 0.0)        # f32 activations
        return h.astype(jnp.bfloat16)                     # bf16 operand for next MXU dot

    h = stage(x_ref[...], s1_ref, w1a_ref, w1b_ref, sh1_ref)
    h = stage(h, s2_ref, w2a_ref, w2b_ref, sh2_ref)
    h = stage(h, s3_ref, w3a_ref, w3b_ref, sh3_ref)
    h = stage(h, s4_ref, w4a_ref, w4b_ref, sh4_ref)
    logits = jnp.dot(h, w5_ref[...], preferred_element_type=jnp.float32) + b5_ref[...]
    # TODO(synk): num_classes=20 < 128 lanes => masked vst on the output; writeback is a
    # tiny fraction of total traffic so we keep f32 logits rather than padding classes.
    o_ref[...] = logits.astype(o_ref.dtype)


def pointwise_refinement_forward(params, pt_feats, skip_pt_feats, *, eps=1e-5,
                                 tn=TN_DEFAULT):
    n, c0 = pt_feats.shape
    skips = list(reversed(skip_pt_feats))  # order in which the stages consume them
    assert len(skips) == len(params["mlp"]) == 4

    # TODO(synk): BatchNorm1d folded with eval-mode running stats (standard inference
    # semantics); PyTorch train mode would use batch statistics instead.
    flat_weights = []
    c_prev = c0
    for p, skip in zip(params["mlp"], skips):
        cout = p["w"].shape[1]
        scale = p["gamma"] / jnp.sqrt(p["var"] + eps)                       # (cout,)
        shift = ((p["b"] - p["mean"]) * scale + p["beta"]).reshape(1, cout)
        shift = shift.astype(jnp.float32)
        ws = (p["w"] * scale[None, :]).astype(jnp.bfloat16)                 # fold BN scale
        flat_weights += [ws[:c_prev], ws[c_prev:], shift]                   # split at concat
        c_prev = cout
    gl = params["gen_logits"]
    num_classes = gl["w"].shape[1]
    flat_weights += [gl["w"].astype(jnp.bfloat16),
                     gl["b"].reshape(1, num_classes).astype(jnp.float32)]

    # bf16 streamed point inputs: halves the HBM read traffic of the dominant streams
    # and keeps the MXU on its native bf16 path (v7x has no f32 MXU path at all).
    x_bf = pt_feats.astype(jnp.bfloat16)
    skips_bf = [s.astype(jnp.bfloat16) for s in skips]

    # Tile only over points.  No host-side padding: grid uses cdiv and the final partial
    # block relies on Pallas OOB-read / masked-store semantics (rows are independent and
    # the out-of-bounds tail rows are never written back).  Cap tn so small clouds still
    # get >= 2 grid steps for the ("parallel",) megacore split on v7x.
    tn = max(8, min(tn, _round_up(pl.cdiv(n, 2), 8)))
    grid = (pl.cdiv(n, tn),)

    point_spec = lambda c: pl.BlockSpec((tn, c), lambda i: (i, 0))
    const_spec = lambda a: pl.BlockSpec(a.shape, lambda i: (0, 0))  # VMEM-resident
    in_specs = (
        [point_spec(c0)]
        + [point_spec(s.shape[1]) for s in skips_bf]
        + [const_spec(w) for w in flat_weights]
    )

    flops = 2 * n * sum(p["w"].shape[0] * p["w"].shape[1] for p in params["mlp"])
    flops += 2 * n * gl["w"].shape[0] * num_classes
    bytes_accessed = (
        2 * (int(x_bf.size) + sum(int(s.size) for s in skips_bf))      # bf16 inputs
        + sum(int(w.size) * w.dtype.itemsize for w in flat_weights)    # resident weights
        + 4 * n * num_classes                                          # f32 logits out
    )

    out = pl.pallas_call(
        _fused_refine_kernel,
        out_shape=jax.ShapeDtypeStruct((n, num_classes), pt_feats.dtype),
        grid_spec=pltpu.PrefetchScalarGridSpec(
            num_scalar_prefetch=0,
            grid=grid,
            in_specs=in_specs,
            out_specs=pl.BlockSpec((tn, num_classes), lambda i: (i, 0)),
        ),
        compiler_params=pltpu.CompilerParams(
            dimension_semantics=("parallel",),
            # TN=4096 bf16 double-buffered working set is ~12-14 MB; give headroom above
            # the v5e 16 MiB default scoped limit while staying < v7x's 64 MiB physical.
            vmem_limit_bytes=48 << 20,
        ),
        cost_estimate=pl.CostEstimate(
            flops=int(flops), transcendentals=0, bytes_accessed=int(bytes_accessed)),
    )(x_bf, *skips_bf, *flat_weights)
    return out


def init_params(key, init_size=8, mlp_channels=None, num_classes=20):
    """Deterministic synthetic parameters matching the PyTorch module shapes."""
    if mlp_channels is None:
        mlp_channels = [64, 128, 256, 64]
    dims = [
        (4 * init_size + mlp_channels[3], 8 * init_size),  # mlp1
        (8 * init_size + mlp_channels[2], 4 * init_size),  # mlp2
        (4 * init_size + mlp_channels[1], 2 * init_size),  # mlp3
        (2 * init_size + mlp_channels[0], init_size),      # mlp4
    ]
    params = {"mlp": []}
    for cin, cout in dims:
        key, kw, kb, kg, kbe, km, kv = jax.random.split(key, 7)
        lim = 1.0 / float(cin) ** 0.5
        params["mlp"].append(dict(
            w=jax.random.uniform(kw, (cin, cout), jnp.float32, -lim, lim),
            b=jax.random.uniform(kb, (cout,), jnp.float32, -lim, lim),
            gamma=1.0 + 0.1 * jax.random.normal(kg, (cout,), jnp.float32),
            beta=0.1 * jax.random.normal(kbe, (cout,), jnp.float32),
            mean=0.1 * jax.random.normal(km, (cout,), jnp.float32),
            var=jax.random.uniform(kv, (cout,), jnp.float32, 0.5, 1.5),
        ))
    key, kw, kb = jax.random.split(key, 3)
    lim = 1.0 / float(init_size) ** 0.5
    params["gen_logits"] = dict(
        w=jax.random.uniform(kw, (init_size, num_classes), jnp.float32, -lim, lim),
        b=jax.random.uniform(kb, (num_classes,), jnp.float32, -lim, lim),
    )
    return params


def _reference_forward_f32(params, pt_feats, skip_pt_feats, eps=1e-5):
    """Pure-JAX f32 reference (concat -> Linear -> BN(eval) -> ReLU, then Linear)."""
    h = pt_feats
    for skip, p in zip(reversed(skip_pt_feats), params["mlp"]):
        x = jnp.concatenate([h, skip], axis=1)
        y = jnp.dot(x, p["w"], precision=jax.lax.Precision.HIGHEST) + p["b"]
        y = (y - p["mean"]) / jnp.sqrt(p["var"] + eps) * p["gamma"] + p["beta"]
        h = jnp.maximum(y, 0.0)
    gl = params["gen_logits"]
    return jnp.dot(h, gl["w"], precision=jax.lax.Precision.HIGHEST) + gl["b"]


def _reference_forward_bf16(params, pt_feats, skip_pt_feats, eps=1e-5):
    """Pure-JAX reference that mirrors the kernel's bf16 folding exactly."""
    h = pt_feats.astype(jnp.bfloat16)
    c_prev = pt_feats.shape[1]
    for skip, p in zip(reversed(skip_pt_feats), params["mlp"]):
        cout = p["w"].shape[1]
        scale = p["gamma"] / jnp.sqrt(p["var"] + eps)
        shift = ((p["b"] - p["mean"]) * scale + p["beta"]).reshape(1, cout)
        ws = (p["w"] * scale[None, :]).astype(jnp.bfloat16)
        acc = jnp.dot(h, ws[:c_prev], preferred_element_type=jnp.float32)
        acc = acc + jnp.dot(skip.astype(jnp.bfloat16), ws[c_prev:],
                            preferred_element_type=jnp.float32)
        h = jnp.maximum(acc + shift, 0.0).astype(jnp.bfloat16)
        c_prev = cout
    gl = params["gen_logits"]
    return (jnp.dot(h, gl["w"].astype(jnp.bfloat16),
                    preferred_element_type=jnp.float32)
            + gl["b"].reshape(1, -1))


if __name__ == "__main__":
    init_size, num_classes = 8, 20
    N = 300  # deliberately not a multiple of the tile to exercise partial-block masking
    mlp_channels = [64, 128, 256, 64]

    root = jax.random.PRNGKey(0)
    kparams, kdata = jax.random.split(root)
    params = init_params(kparams, init_size, None, num_classes)

    keys = jax.random.split(kdata, 5)
    pt_feats = jax.random.normal(keys[0], (N, 4 * init_size), jnp.float32)
    skip_pt_feats = [
        jax.random.normal(k, (N, c), jnp.float32)
        for k, c in zip(keys[1:], mlp_channels)
    ]

    logits = pointwise_refinement_forward(params, pt_feats, skip_pt_feats)
    jax.block_until_ready(logits)
    assert logits.shape == (N, num_classes), logits.shape
    assert logits.dtype == jnp.float32

    # Tight check against a reference that uses the same bf16 folding as the kernel.
    ref_bf16 = _reference_forward_bf16(params, pt_feats, skip_pt_feats)
    assert jnp.allclose(logits, ref_bf16, atol=1e-2, rtol=1e-2), float(
        jnp.max(jnp.abs(logits - ref_bf16)))

    # Looser sanity check against the full-f32 (HIGHEST) reference: bf16 casts through
    # the 4-stage chain introduce ~1e-2 relative error.
    ref_f32 = _reference_forward_f32(params, pt_feats, skip_pt_feats)
    assert jnp.allclose(logits, ref_f32, atol=1e-1, rtol=1e-1), float(
        jnp.max(jnp.abs(logits - ref_f32)))

    print("KERNEL_OK")
</pallas_src>

<mosaic_0001>
module attributes {stable_mosaic.version = 11 : i64} {
  func.func @_fused_refine_kernel(%arg0: i32, %arg1: memref<152x32xbf16, #tpu.memory_space<vmem>>, %arg2: memref<152x64xbf16, #tpu.memory_space<vmem>>, %arg3: memref<152x256xbf16, #tpu.memory_space<vmem>>, %arg4: memref<152x128xbf16, #tpu.memory_space<vmem>>, %arg5: memref<152x64xbf16, #tpu.memory_space<vmem>>, %arg6: memref<32x64xbf16, #tpu.memory_space<vmem>>, %arg7: memref<64x64xbf16, #tpu.memory_space<vmem>>, %arg8: memref<1x64xf32, #tpu.memory_space<vmem>>, %arg9: memref<64x32xbf16, #tpu.memory_space<vmem>>, %arg10: memref<256x32xbf16, #tpu.memory_space<vmem>>, %arg11: memref<1x32xf32, #tpu.memory_space<vmem>>, %arg12: memref<32x16xbf16, #tpu.memory_space<vmem>>, %arg13: memref<128x16xbf16, #tpu.memory_space<vmem>>, %arg14: memref<1x16xf32, #tpu.memory_space<vmem>>, %arg15: memref<16x8xbf16, #tpu.memory_space<vmem>>, %arg16: memref<64x8xbf16, #tpu.memory_space<vmem>>, %arg17: memref<1x8xf32, #tpu.memory_space<vmem>>, %arg18: memref<8x20xbf16, #tpu.memory_space<vmem>>, %arg19: memref<1x20xf32, #tpu.memory_space<vmem>>, %arg20: memref<152x20xf32, #tpu.memory_space<vmem>>) attributes {dimension_semantics = [#tpu.dimension_semantics<parallel>], iteration_bounds = array<i64: 2>, scalar_prefetch = 0 : i64, scratch_operands = 0 : i64, tpu.core_type = #tpu.core_type<tc>, window_params = [{transform_indices = @transform_0, window_bounds = array<i64: 152, 32>}, {transform_indices = @transform_1, window_bounds = array<i64: 152, 64>}, {transform_indices = @transform_2, window_bounds = array<i64: 152, 256>}, {transform_indices = @transform_3, window_bounds = array<i64: 152, 128>}, {transform_indices = @transform_4, window_bounds = array<i64: 152, 64>}, {pipeline_mode = #tpu.pipeline_mode<synchronous>, transform_indices = @transform_5, window_bounds = array<i64: 32, 64>}, {pipeline_mode = #tpu.pipeline_mode<synchronous>, transform_indices = @transform_6, window_bounds = array<i64: 64, 64>}, {pipeline_mode = #tpu.pipeline_mode<synchronous>, transform_indices = @transform_7, window_bounds = array<i64: 1, 64>}, {pipeline_mode = #tpu.pipeline_mode<synchronous>, transform_indices = @transform_8, window_bounds = array<i64: 64, 32>}, {pipeline_mode = #tpu.pipeline_mode<synchronous>, transform_indices = @transform_9, window_bounds = array<i64: 256, 32>}, {pipeline_mode = #tpu.pipeline_mode<synchronous>, transform_indices = @transform_10, window_bounds = array<i64: 1, 32>}, {pipeline_mode = #tpu.pipeline_mode<synchronous>, transform_indices = @transform_11, window_bounds = array<i64: 32, 16>}, {pipeline_mode = #tpu.pipeline_mode<synchronous>, transform_indices = @transform_12, window_bounds = array<i64: 128, 16>}, {pipeline_mode = #tpu.pipeline_mode<synchronous>, transform_indices = @transform_13, window_bounds = array<i64: 1, 16>}, {pipeline_mode = #tpu.pipeline_mode<synchronous>, transform_indices = @transform_14, window_bounds = array<i64: 16, 8>}, {pipeline_mode = #tpu.pipeline_mode<synchronous>, transform_indices = @transform_15, window_bounds = array<i64: 64, 8>}, {pipeline_mode = #tpu.pipeline_mode<synchronous>, transform_indices = @transform_16, window_bounds = array<i64: 1, 8>}, {pipeline_mode = #tpu.pipeline_mode<synchronous>, transform_indices = @transform_17, window_bounds = array<i64: 8, 20>}, {pipeline_mode = #tpu.pipeline_mode<synchronous>, transform_indices = @transform_18, window_bounds = array<i64: 1, 20>}, {transform_indices = @transform_19, window_bounds = array<i64: 152, 20>}]} {
    %c0 = arith.constant 0 : index
    %c0_0 = arith.constant 0 : index
    %0 = vector.load %arg1[%c0, %c0_0] : memref<152x32xbf16, #tpu.memory_space<vmem>>, vector<152x32xbf16>
    %c0_1 = arith.constant 0 : index
    %c0_2 = arith.constant 0 : index
    %1 = vector.load %arg6[%c0_1, %c0_2] : memref<32x64xbf16, #tpu.memory_space<vmem>>, vector<32x64xbf16>
    %cst = arith.constant dense<0.000000e+00> : vector<152x64xf32>
    %2 = tpu.matmul %0, %1, %cst {dimension_numbers = #tpu.dot_dimension_numbers<[1], [0], [0], [1], [0, 0, 1, 1], [], []>} : vector<152x32xbf16>, vector<32x64xbf16>, vector<152x64xf32> -> vector<152x64xf32>
    %c0_3 = arith.constant 0 : index
    %c0_4 = arith.constant 0 : index
    %3 = vector.load %arg2[%c0_3, %c0_4] : memref<152x64xbf16, #tpu.memory_space<vmem>>, vector<152x64xbf16>
    %c0_5 = arith.constant 0 : index
    %c0_6 = arith.constant 0 : index
    %4 = vector.load %arg7[%c0_5, %c0_6] : memref<64x64xbf16, #tpu.memory_space<vmem>>, vector<64x64xbf16>
    %cst_7 = arith.constant dense<0.000000e+00> : vector<152x64xf32>
    %5 = tpu.matmul %3, %4, %cst_7 {dimension_numbers = #tpu.dot_dimension_numbers<[1], [0], [0], [1], [0, 0, 1, 1], [], []>} : vector<152x64xbf16>, vector<64x64xbf16>, vector<152x64xf32> -> vector<152x64xf32>
    %6 = arith.addf %2, %5 : vector<152x64xf32>
    %c0_8 = arith.constant 0 : index
    %c0_9 = arith.constant 0 : index
    %7 = vector.load %arg8[%c0_8, %c0_9] : memref<1x64xf32, #tpu.memory_space<vmem>>, vector<1x64xf32>
    %8 = vector.broadcast %7 : vector<1x64xf32> to vector<152x64xf32>
    %9 = arith.addf %6, %8 : vector<152x64xf32>
    %cst_10 = arith.constant 0.000000e+00 : f32
    %10 = vector.broadcast %cst_10 : f32 to vector<152x64xf32>
    %11 = arith.maximumf %9, %10 : vector<152x64xf32>
    %12 = arith.truncf %11 : vector<152x64xf32> to vector<152x64xbf16>
    %c0_11 = arith.constant 0 : index
    %c0_12 = arith.constant 0 : index
    %13 = vector.load %arg9[%c0_11, %c0_12] : memref<64x32xbf16, #tpu.memory_space<vmem>>, vector<64x32xbf16>
    %cst_13 = arith.constant dense<0.000000e+00> : vector<152x32xf32>
    %14 = tpu.matmul %12, %13, %cst_13 {dimension_numbers = #tpu.dot_dimension_numbers<[1], [0], [0], [1], [0, 0, 1, 1], [], []>} : vector<152x64xbf16>, vector<64x32xbf16>, vector<152x32xf32> -> vector<152x32xf32>
    %c0_14 = arith.constant 0 : index
    %c0_15 = arith.constant 0 : index
    %15 = vector.load %arg3[%c0_14, %c0_15] : memref<152x256xbf16, #tpu.memory_space<vmem>>, vector<152x256xbf16>
    %c0_16 = arith.constant 0 : index
    %c0_17 = arith.constant 0 : index
    %16 = vector.load %arg10[%c0_16, %c0_17] : memref<256x32xbf16, #tpu.memory_space<vmem>>, vector<256x32xbf16>
    %cst_18 = arith.constant dense<0.000000e+00> : vector<152x32xf32>
    %17 = tpu.matmul %15, %16, %cst_18 {dimension_numbers = #tpu.dot_dimension_numbers<[1], [0], [0], [1], [0, 0, 1, 1], [], []>} : vector<152x256xbf16>, vector<256x32xbf16>, vector<152x32xf32> -> vector<152x32xf32>
    %18 = arith.addf %14, %17 : vector<152x32xf32>
    %c0_19 = arith.constant 0 : index
    %c0_20 = arith.constant 0 : index
    %19 = vector.load %arg11[%c0_19, %c0_20] : memref<1x32xf32, #tpu.memory_space<vmem>>, vector<1x32xf32>
    %20 = vector.broadcast %19 : vector<1x32xf32> to vector<152x32xf32>
    %21 = arith.addf %18, %20 : vector<152x32xf32>
    %cst_21 = arith.constant 0.000000e+00 : f32
    %22 = vector.broadcast %cst_21 : f32 to vector<152x32xf32>
    %23 = arith.maximumf %21, %22 : vector<152x32xf32>
    %24 = arith.truncf %23 : vector<152x32xf32> to vector<152x32xbf16>
    %c0_22 = arith.constant 0 : index
    %c0_23 = arith.constant 0 : index
    %25 = vector.load %arg12[%c0_22, %c0_23] : memref<32x16xbf16, #tpu.memory_space<vmem>>, vector<32x16xbf16>
    %cst_24 = arith.constant dense<0.000000e+00> : vector<152x16xf32>
    %26 = tpu.matmul %24, %25, %cst_24 {dimension_numbers = #tpu.dot_dimension_numbers<[1], [0], [0], [1], [0, 0, 1, 1], [], []>} : vector<152x32xbf16>, vector<32x16xbf16>, vector<152x16xf32> -> vector<152x16xf32>
    %c0_25 = arith.constant 0 : index
    %c0_26 = arith.constant 0 : index
    %27 = vector.load %arg4[%c0_25, %c0_26] : memref<152x128xbf16, #tpu.memory_space<vmem>>, vector<152x128xbf16>
    %c0_27 = arith.constant 0 : index
    %c0_28 = arith.constant 0 : index
    %28 = vector.load %arg13[%c0_27, %c0_28] : memref<128x16xbf16, #tpu.memory_space<vmem>>, vector<128x16xbf16>
    %cst_29 = arith.constant dense<0.000000e+00> : vector<152x16xf32>
    %29 = tpu.matmul %27, %28, %cst_29 {dimension_numbers = #tpu.dot_dimension_numbers<[1], [0], [0], [1], [0, 0, 1, 1], [], []>} : vector<152x128xbf16>, vector<128x16xbf16>, vector<152x16xf32> -> vector<152x16xf32>
    %30 = arith.addf %26, %29 : vector<152x16xf32>
    %c0_30 = arith.constant 0 : index
    %c0_31 = arith.constant 0 : index
    %31 = vector.load %arg14[%c0_30, %c0_31] : memref<1x16xf32, #tpu.memory_space<vmem>>, vector<1x16xf32>
    %32 = vector.broadcast %31 : vector<1x16xf32> to vector<152x16xf32>
    %33 = arith.addf %30, %32 : vector<152x16xf32>
    %cst_32 = arith.constant 0.000000e+00 : f32
    %34 = vector.broadcast %cst_32 : f32 to vector<152x16xf32>
    %35 = arith.maximumf %33, %34 : vector<152x16xf32>
    %36 = arith.truncf %35 : vector<152x16xf32> to vector<152x16xbf16>
    %c0_33 = arith.constant 0 : index
    %c0_34 = arith.constant 0 : index
    %37 = vector.load %arg15[%c0_33, %c0_34] : memref<16x8xbf16, #tpu.memory_space<vmem>>, vector<16x8xbf16>
    %cst_35 = arith.constant dense<0.000000e+00> : vector<152x8xf32>
    %38 = tpu.matmul %36, %37, %cst_35 {dimension_numbers = #tpu.dot_dimension_numbers<[1], [0], [0], [1], [0, 0, 1, 1], [], []>} : vector<152x16xbf16>, vector<16x8xbf16>, vector<152x8xf32> -> vector<152x8xf32>
    %c0_36 = arith.constant 0 : index
    %c0_37 = arith.constant 0 : index
    %39 = vector.load %arg5[%c0_36, %c0_37] : memref<152x64xbf16, #tpu.memory_space<vmem>>, vector<152x64xbf16>
    %c0_38 = arith.constant 0 : index
    %c0_39 = arith.constant 0 : index
    %40 = vector.load %arg16[%c0_38, %c0_39] : memref<64x8xbf16, #tpu.memory_space<vmem>>, vector<64x8xbf16>
    %cst_40 = arith.constant dense<0.000000e+00> : vector<152x8xf32>
    %41 = tpu.matmul %39, %40, %cst_40 {dimension_numbers = #tpu.dot_dimension_numbers<[1], [0], [0], [1], [0, 0, 1, 1], [], []>} : vector<152x64xbf16>, vector<64x8xbf16>, vector<152x8xf32> -> vector<152x8xf32>
    %42 = arith.addf %38, %41 : vector<152x8xf32>
    %c0_41 = arith.constant 0 : index
    %c0_42 = arith.constant 0 : index
    %43 = vector.load %arg17[%c0_41, %c0_42] : memref<1x8xf32, #tpu.memory_space<vmem>>, vector<1x8xf32>
    %44 = vector.broadcast %43 : vector<1x8xf32> to vector<152x8xf32>
    %45 = arith.addf %42, %44 : vector<152x8xf32>
    %cst_43 = arith.constant 0.000000e+00 : f32
    %46 = vector.broadcast %cst_43 : f32 to vector<152x8xf32>
    %47 = arith.maximumf %45, %46 : vector<152x8xf32>
    %48 = arith.truncf %47 : vector<152x8xf32> to vector<152x8xbf16>
    %c0_44 = arith.constant 0 : index
    %c0_45 = arith.constant 0 : index
    %49 = vector.load %arg18[%c0_44, %c0_45] : memref<8x20xbf16, #tpu.memory_space<vmem>>, vector<8x20xbf16>
    %cst_46 = arith.constant dense<0.000000e+00> : vector<152x20xf32>
    %50 = tpu.matmul %48, %49, %cst_46 {dimension_numbers = #tpu.dot_dimension_numbers<[1], [0], [0], [1], [0, 0, 1, 1], [], []>} : vector<152x8xbf16>, vector<8x20xbf16>, vector<152x20xf32> -> vector<152x20xf32>
    %c0_47 = arith.constant 0 : index
    %c0_48 = arith.constant 0 : index
    %51 = vector.load %arg19[%c0_47, %c0_48] : memref<1x20xf32, #tpu.memory_space<vmem>>, vector<1x20xf32>
    %52 = vector.broadcast %51 : vector<1x20xf32> to vector<152x20xf32>
    %53 = arith.addf %50, %52 : vector<152x20xf32>
    %c0_49 = arith.constant 0 : index
    %c0_50 = arith.constant 0 : index
    %54 = vector.load %arg20[%c0_49, %c0_50] : memref<152x20xf32, #tpu.memory_space<vmem>>, vector<152x20xf32>
    tpu.vector_store %arg20[%c0_49, %c0_50], %53 {strides = array<i32>} : memref<152x20xf32, #tpu.memory_space<vmem>>, vector<152x20xf32>,
    return
  }
  func.func @transform_0(%arg0: i32) -> (i32, i32) {
    %c0_i32 = arith.constant 0 : i32
    %c0_i32_0 = arith.constant 0 : i32
    return %arg0, %c0_i32 : i32, i32
  }
  func.func @transform_1(%arg0: i32) -> (i32, i32) {
    %c0_i32 = arith.constant 0 : i32
    %c0_i32_0 = arith.constant 0 : i32
    return %arg0, %c0_i32 : i32, i32
  }
  func.func @transform_2(%arg0: i32) -> (i32, i32) {
    %c0_i32 = arith.constant 0 : i32
    %c0_i32_0 = arith.constant 0 : i32
    return %arg0, %c0_i32 : i32, i32
  }
  func.func @transform_3(%arg0: i32) -> (i32, i32) {
    %c0_i32 = arith.constant 0 : i32
    %c0_i32_0 = arith.constant 0 : i32
    return %arg0, %c0_i32 : i32, i32
  }
  func.func @transform_4(%arg0: i32) -> (i32, i32) {
    %c0_i32 = arith.constant 0 : i32
    %c0_i32_0 = arith.constant 0 : i32
    return %arg0, %c0_i32 : i32, i32
  }
  func.func @transform_5(%arg0: i32) -> (i32, i32) {
    %c0_i32 = arith.constant 0 : i32
    %c0_i32_0 = arith.constant 0 : i32
    %c0_i32_1 = arith.constant 0 : i32
    return %c0_i32, %c0_i32_0 : i32, i32
  }
  func.func @transform_6(%arg0: i32) -> (i32, i32) {
    %c0_i32 = arith.constant 0 : i32
    %c0_i32_0 = arith.constant 0 : i32
    %c0_i32_1 = arith.constant 0 : i32
    return %c0_i32, %c0_i32_0 : i32, i32
  }
  func.func @transform_7(%arg0: i32) -> (i32, i32) {
    %c0_i32 = arith.constant 0 : i32
    %c0_i32_0 = arith.constant 0 : i32
    %c0_i32_1 = arith.constant 0 : i32
    return %c0_i32, %c0_i32_0 : i32, i32
  }
  func.func @transform_8(%arg0: i32) -> (i32, i32) {
    %c0_i32 = arith.constant 0 : i32
    %c0_i32_0 = arith.constant 0 : i32
    %c0_i32_1 = arith.constant 0 : i32
    return %c0_i32, %c0_i32_0 : i32, i32
  }
  func.func @transform_9(%arg0: i32) -> (i32, i32) {
    %c0_i32 = arith.constant 0 : i32
    %c0_i32_0 = arith.constant 0 : i32
    %c0_i32_1 = arith.constant 0 : i32
    return %c0_i32, %c0_i32_0 : i32, i32
  }
  func.func @transform_10(%arg0: i32) -> (i32, i32) {
    %c0_i32 = arith.constant 0 : i32
    %c0_i32_0 = arith.constant 0 : i32
    %c0_i32_1 = arith.constant 0 : i32
    return %c0_i32, %c0_i32_0 : i32, i32
  }
  func.func @transform_11(%arg0: i32) -> (i32, i32) {
    %c0_i32 = arith.constant 0 : i32
    %c0_i32_0 = arith.constant 0 : i32
    %c0_i32_1 = arith.constant 0 : i32
    return %c0_i32, %c0_i32_0 : i32, i32
  }
  func.func @transform_12(%arg0: i32) -> (i32, i32) {
    %c0_i32 = arith.constant 0 : i32
    %c0_i32_0 = arith.constant 0 : i32
    %c0_i32_1 = arith.constant 0 : i32
    return %c0_i32, %c0_i32_0 : i32, i32
  }
  func.func @transform_13(%arg0: i32) -> (i32, i32) {
    %c0_i32 = arith.constant 0 : i32
    %c0_i32_0 = arith.constant 0 : i32
    %c0_i32_1 = arith.constant 0 : i32
    return %c0_i32, %c0_i32_0 : i32, i32
  }
  func.func @transform_14(%arg0: i32) -> (i32, i32) {
    %c0_i32 = arith.constant 0 : i32
    %c0_i32_0 = arith.constant 0 : i32
    %c0_i32_1 = arith.constant 0 : i32
    return %c0_i32, %c0_i32_0 : i32, i32
  }
  func.func @transform_15(%arg0: i32) -> (i32, i32) {
    %c0_i32 = arith.constant 0 : i32
    %c0_i32_0 = arith.constant 0 : i32
    %c0_i32_1 = arith.constant 0 : i32
    return %c0_i32, %c0_i32_0 : i32, i32
  }
  func.func @transform_16(%arg0: i32) -> (i32, i32) {
    %c0_i32 = arith.constant 0 : i32
    %c0_i32_0 = arith.constant 0 : i32
    %c0_i32_1 = arith.constant 0 : i32
    return %c0_i32, %c0_i32_0 : i32, i32
  }
  func.func @transform_17(%arg0: i32) -> (i32, i32) {
    %c0_i32 = arith.constant 0 : i32
    %c0_i32_0 = arith.constant 0 : i32
    %c0_i32_1 = arith.constant 0 : i32
    return %c0_i32, %c0_i32_0 : i32, i32
  }
  func.func @transform_18(%arg0: i32) -> (i32, i32) {
    %c0_i32 = arith.constant 0 : i32
    %c0_i32_0 = arith.constant 0 : i32
    %c0_i32_1 = arith.constant 0 : i32
    return %c0_i32, %c0_i32_0 : i32, i32
  }
  func.func @transform_19(%arg0: i32) -> (i32, i32) {
    %c0_i32 = arith.constant 0 : i32
    %c0_i32_0 = arith.constant 0 : i32
    return %arg0, %c0_i32 : i32, i32
  }
}

</mosaic_0001>

<llo_original>
// kernel: tpu_custom_call.1
$region0: #{tpu_custom_call.1}
  #allocation0 [shape = 'u32[]', space=smem, size = 0x4, offset = 0x4, fixed_abs, tag = 'smem constant byte address 0x4 - core index']
  #allocation1 [shape = 'u32[144,128]{1,0:T(1,128)}', space=vmem, size = 0x12000, scoped, tag = 'internal scratch']
  %s0 = inlined_call_operand.vmem [shape: bf16[300,32], index: 0, kind: input, shape index: {}]
  %s1 = inlined_call_operand.vmem [shape: bf16[300,64], index: 1, kind: input, shape index: {}]
  %s2 = inlined_call_operand.vmem [shape: bf16[300,256], index: 2, kind: input, shape index: {}]
  %s3 = inlined_call_operand.vmem [shape: bf16[300,128], index: 3, kind: input, shape index: {}]
  %s4 = inlined_call_operand.vmem [shape: bf16[300,64], index: 4, kind: input, shape index: {}]
  %s5 = inlined_call_operand.vmem [shape: bf16[32,64], index: 5, kind: input, shape index: {}]
  %s6 = inlined_call_operand.vmem [shape: bf16[64,64], index: 6, kind: input, shape index: {}]
  %s7 = inlined_call_operand.vmem [shape: f32[1,64], index: 7, kind: input, shape index: {}]
  %s8 = inlined_call_operand.vmem [shape: bf16[64,32], index: 8, kind: input, shape index: {}]
  %s9 = inlined_call_operand.vmem [shape: bf16[256,32], index: 9, kind: input, shape index: {}]
  %s10 = inlined_call_operand.vmem [shape: f32[1,32], index: 10, kind: input, shape index: {}]
  %s11 = inlined_call_operand.vmem [shape: bf16[32,16], index: 11, kind: input, shape index: {}]
  %s12 = inlined_call_operand.vmem [shape: bf16[128,16], index: 12, kind: input, shape index: {}]
  %s13 = inlined_call_operand.vmem [shape: f32[1,16], index: 13, kind: input, shape index: {}]
  %s14 = inlined_call_operand.vmem [shape: bf16[16,8], index: 14, kind: input, shape index: {}]
  %s15 = inlined_call_operand.vmem [shape: bf16[64,8], index: 15, kind: input, shape index: {}]
  %s16 = inlined_call_operand.vmem [shape: f32[1,8], index: 16, kind: input, shape index: {}]
  %s17 = inlined_call_operand.vmem [shape: bf16[8,20], index: 17, kind: input, shape index: {}]
  %s18 = inlined_call_operand.vmem [shape: f32[1,20], index: 18, kind: input, shape index: {}]
  %s19 = inlined_call_operand.vmem [shape: f32[300,20], index: 19, kind: output, shape index: {}]
  %s20 = sld [smem:[#allocation0]]
  $region109: #{tpu_custom_call.1} parent=0
    _
  %s22 = ssub.s32 1, %s20
  %s23 = scalar_select 0, %s22, %s20
  loop: start=0, step=1, limit=4
  $region2: #{tpu_custom_call.1} parent=0 // loop_pre_header
    _
  $region3: #{tpu_custom_call.1} parent=0 // loop_header
    %s25 = sphi 0, %s29
    %p26 = scmp.ge.s32.totalorder %s25, 4
    %s35 = sphi 0, %s37
    %s38 = sphi 0, %s35
    %s39 = sphi 0, %s38
    %s55 = sphi 0, %s39
    %s61 = sphi 0, %s63
    %s64 = sphi 0, %s61
    %s65 = sphi 0, %s64
    %s81 = sphi 0, %s65
    %s87 = sphi 0, %s89
    %s90 = sphi 0, %s87
    %s91 = sphi 0, %s90
    %s107 = sphi 0, %s91
    %s113 = sphi 0, %s115
    %s116 = sphi 0, %s113
    %s117 = sphi 0, %s116
    %s133 = sphi 0, %s117
    %s139 = sphi 0, %s141
    %s142 = sphi 0, %s139
    %s143 = sphi 0, %s142
    %s159 = sphi 0, %s143
    %s163 = sphi 0, %s163
    %s165 = sphi 0, %s163
    %s166 = sphi 0, %s165
    %s180 = sphi 0, %s166
    %s184 = sphi 0, %s184
    %s186 = sphi 0, %s184
    %s187 = sphi 0, %s186
    %s201 = sphi 0, %s187
    %s205 = sphi 0, %s205
    %s207 = sphi 0, %s205
    %s208 = sphi 0, %s207
    %s222 = sphi 0, %s208
    %s226 = sphi 0, %s226
    %s228 = sphi 0, %s226
    %s229 = sphi 0, %s228
    %s243 = sphi 0, %s229
    %s247 = sphi 0, %s247
    %s249 = sphi 0, %s247
    %s250 = sphi 0, %s249
    %s264 = sphi 0, %s250
    %s268 = sphi 0, %s268
    %s270 = sphi 0, %s268
    %s271 = sphi 0, %s270
    %s285 = sphi 0, %s271
    %s289 = sphi 0, %s289
    %s291 = sphi 0, %s289
    %s292 = sphi 0, %s291
    %s306 = sphi 0, %s292
    %s310 = sphi 0, %s310
    %s312 = sphi 0, %s310
    %s313 = sphi 0, %s312
    %s327 = sphi 0, %s313
    %s331 = sphi 0, %s331
    %s333 = sphi 0, %s331
    %s334 = sphi 0, %s333
    %s348 = sphi 0, %s334
    %s352 = sphi 0, %s352
    %s354 = sphi 0, %s352
    %s355 = sphi 0, %s354
    %s369 = sphi 0, %s355
    %s373 = sphi 0, %s373
    %s375 = sphi 0, %s373
    %s376 = sphi 0, %s375
    %s390 = sphi 0, %s376
    %s394 = sphi 0, %s394
    %s396 = sphi 0, %s394
    %s397 = sphi 0, %s396
    %s411 = sphi 0, %s397
    %s415 = sphi 0, %s415
    %s417 = sphi 0, %s415
    %s418 = sphi 0, %s417
    %s432 = sphi 0, %s418
    %s436 = sphi 0, %s436
    %s438 = sphi 0, %s436
    %s439 = sphi 0, %s438
    %s453 = sphi 0, %s439
    %s459 = sphi 0, %s461
    %s462 = sphi 0, %s459
    %s463 = sphi 0, %s462
    %s479 = sphi 0, %s463
  $region4: #{tpu_custom_call.1} parent=0 // loop_header_branch
    %28 = sbr.rel (%p26) target = $region8
  $region5: #{tpu_custom_call.1} parent=0 // loop_body
    %s30 = ssub.s32 %s25, 1
    %s31 = ssub.s32 %s25, 2
    %s32 = sadd.s32 %s25, 1
    %s33 = ssub.s32 %s25, %s32
    %p34 = scmp.eq.s32.totalorder %s33, 0
    %s36 = sadd.s32 %s35, 1
    %s37 = scalar_select %p34, %s35, %s36
    %p40 = pneg %p34
    %p41 = scmp.eq.s32.totalorder %s25, 1
    %p42 = por %p40, %p41
    %p43 = scmp.ne.s32.totalorder %s35, %s38
    %p44 = scmp.eq.s32.totalorder %s25, 0
    %p45 = por %p43, %p44
    %p46 = scmp.ne.s32.totalorder %s35, %s38
    %p47 = scmp.eq.s32.totalorder %s30, 1
    %p48 = por %p46, %p47
    %p49 = scmp.ne.s32.totalorder %s38, %s39
    %p50 = scmp.eq.s32.totalorder %s30, 0
    %p51 = por %p49, %p50
    %p52 = scmp.ne.s32.totalorder %s38, %s39
    %p53 = scmp.eq.s32.totalorder %s31, 1
    %p54 = por %p52, %p53
    %p56 = scmp.ne.s32.totalorder %s39, %s55
    %p57 = scmp.eq.s32.totalorder %s31, 0
    %p58 = por %p56, %p57
    %s59 = ssub.s32 %s25, %s32
    %p60 = scmp.eq.s32.totalorder %s59, 0
    %s62 = sadd.s32 %s61, 1
    %s63 = scalar_select %p60, %s61, %s62
    %p66 = pneg %p60
    %p67 = scmp.eq.s32.totalorder %s25, 1
    %p68 = por %p66, %p67
    %p69 = scmp.ne.s32.totalorder %s61, %s64
    %p70 = scmp.eq.s32.totalorder %s25, 0
    %p71 = por %p69, %p70
    %p72 = scmp.ne.s32.totalorder %s61, %s64
    %p73 = scmp.eq.s32.totalorder %s30, 1
    %p74 = por %p72, %p73
    %p75 = scmp.ne.s32.totalorder %s64, %s65
    %p76 = scmp.eq.s32.totalorder %s30, 0
    %p77 = por %p75, %p76
    %p78 = scmp.ne.s32.totalorder %s64, %s65
    %p79 = scmp.eq.s32.totalorder %s31, 1
    %p80 = por %p78, %p79
    %p82 = scmp.ne.s32.totalorder %s65, %s81
    %p83 = scmp.eq.s32.totalorder %s31, 0
    %p84 = por %p82, %p83
    %s85 = ssub.s32 %s25, %s32
    %p86 = scmp.eq.s32.totalorder %s85, 0
    %s88 = sadd.s32 %s87, 1
    %s89 = scalar_select %p86, %s87, %s88
    %p92 = pneg %p86
    %p93 = scmp.eq.s32.totalorder %s25, 1
    %p94 = por %p92, %p93
    %p95 = scmp.ne.s32.totalorder %s87, %s90
    %p96 = scmp.eq.s32.totalorder %s25, 0
    %p97 = por %p95, %p96
    %p98 = scmp.ne.s32.totalorder %s87, %s90
    %p99 = scmp.eq.s32.totalorder %s30, 1
    %p100 = por %p98, %p99
    %p101 = scmp.ne.s32.totalorder %s90, %s91
    %p102 = scmp.eq.s32.totalorder %s30, 0
    %p103 = por %p101, %p102
    %p104 = scmp.ne.s32.totalorder %s90, %s91
    %p105 = scmp.eq.s32.totalorder %s31, 1
    %p106 = por %p104, %p105
    %p108 = scmp.ne.s32.totalorder %s91, %s107
    %p109 = scmp.eq.s32.totalorder %s31, 0
    %p110 = por %p108, %p109
    %s111 = ssub.s32 %s25, %s32
    %p112 = scmp.eq.s32.totalorder %s111, 0
    %s114 = sadd.s32 %s113, 1
    %s115 = scalar_select %p112, %s113, %s114
    %p118 = pneg %p112
    %p119 = scmp.eq.s32.totalorder %s25, 1
    %p120 = por %p118, %p119
    %p121 = scmp.ne.s32.totalorder %s113, %s116
    %p122 = scmp.eq.s32.totalorder %s25, 0
    %p123 = por %p121, %p122
    %p124 = scmp.ne.s32.totalorder %s113, %s116
    %p125 = scmp.eq.s32.totalorder %s30, 1
    %p126 = por %p124, %p125
    %p127 = scmp.ne.s32.totalorder %s116, %s117
    %p128 = scmp.eq.s32.totalorder %s30, 0
    %p129 = por %p127, %p128
    %p130 = scmp.ne.s32.totalorder %s116, %s117
    %p131 = scmp.eq.s32.totalorder %s31, 1
    %p132 = por %p130, %p131
    %p134 = scmp.ne.s32.totalorder %s117, %s133
    %p135 = scmp.eq.s32.totalorder %s31, 0
    %p136 = por %p134, %p135
    %s137 = ssub.s32 %s25, %s32
    %p138 = scmp.eq.s32.totalorder %s137, 0
    %s140 = sadd.s32 %s139, 1
    %s141 = scalar_select %p138, %s139, %s140
    %p144 = pneg %p138
    %p145 = scmp.eq.s32.totalorder %s25, 1
    %p146 = por %p144, %p145
    %p147 = scmp.ne.s32.totalorder %s139, %s142
    %p148 = scmp.eq.s32.totalorder %s25, 0
    %p149 = por %p147, %p148
    %p150 = scmp.ne.s32.totalorder %s139, %s142
    %p151 = scmp.eq.s32.totalorder %s30, 1
    %p152 = por %p150, %p151
    %p153 = scmp.ne.s32.totalorder %s142, %s143
    %p154 = scmp.eq.s32.totalorder %s30, 0
    %p155 = por %p153, %p154
    %p156 = scmp.ne.s32.totalorder %s142, %s143
    %p157 = scmp.eq.s32.totalorder %s31, 1
    %p158 = por %p156, %p157
    %p160 = scmp.ne.s32.totalorder %s143, %s159
    %p161 = scmp.eq.s32.totalorder %s31, 0
    %p162 = por %p160, %p161
    %s164 = sadd.s32 %s163, 1
    %p167 = scmp.eq.s32.totalorder %s25, 1
    %p168 = scmp.ne.s32.totalorder %s163, %s165
    %p169 = scmp.eq.s32.totalorder %s25, 0
    %p170 = por %p168, %p169
    %p171 = scmp.ne.s32.totalorder %s163, %s165
    %p172 = scmp.eq.s32.totalorder %s30, 1
    %p173 = por %p171, %p172
    %p174 = scmp.ne.s32.totalorder %s165, %s166
    %p175 = scmp.eq.s32.totalorder %s30, 0
    %p176 = por %p174, %p175
    %p177 = scmp.ne.s32.totalorder %s165, %s166
    %p178 = scmp.eq.s32.totalorder %s31, 1
    %p179 = por %p177, %p178
    %p181 = scmp.ne.s32.totalorder %s166, %s180
    %p182 = scmp.eq.s32.totalorder %s31, 0
    %p183 = por %p181, %p182
    %s185 = sadd.s32 %s184, 1
    %p188 = scmp.eq.s32.totalorder %s25, 1
    %p189 = scmp.ne.s32.totalorder %s184, %s186
    %p190 = scmp.eq.s32.totalorder %s25, 0
    %p191 = por %p189, %p190
    %p192 = scmp.ne.s32.totalorder %s184, %s186
    %p193 = scmp.eq.s32.totalorder %s30, 1
    %p194 = por %p192, %p193
    %p195 = scmp.ne.s32.totalorder %s186, %s187
    %p196 = scmp.eq.s32.totalorder %s30, 0
    %p197 = por %p195, %p196
    %p198 = scmp.ne.s32.totalorder %s186, %s187
    %p199 = scmp.eq.s32.totalorder %s31, 1
    %p200 = por %p198, %p199
    %p202 = scmp.ne.s32.totalorder %s187, %s201
    %p203 = scmp.eq.s32.totalorder %s31, 0
    %p204 = por %p202, %p203
    %s206 = sadd.s32 %s205, 1
    %p209 = scmp.eq.s32.totalorder %s25, 1
    %p210 = scmp.ne.s32.totalorder %s205, %s207
    %p211 = scmp.eq.s32.totalorder %s25, 0
    %p212 = por %p210, %p211
    %p213 = scmp.ne.s32.totalorder %s205, %s207
    %p214 = scmp.eq.s32.totalorder %s30, 1
    %p215 = por %p213, %p214
    %p216 = scmp.ne.s32.totalorder %s207, %s208
    %p217 = scmp.eq.s32.totalorder %s30, 0
    %p218 = por %p216, %p217
    %p219 = scmp.ne.s32.totalorder %s207, %s208
    %p220 = scmp.eq.s32.totalorder %s31, 1
    %p221 = por %p219, %p220
    %p223 = scmp.ne.s32.totalorder %s208, %s222
    %p224 = scmp.eq.s32.totalorder %s31, 0
    %p225 = por %p223, %p224
    %s227 = sadd.s32 %s226, 1
    %p230 = scmp.eq.s32.totalorder %s25, 1
    %p231 = scmp.ne.s32.totalorder %s226, %s228
    %p232 = scmp.eq.s32.totalorder %s25, 0
    %p233 = por %p231, %p232
    %p234 = scmp.ne.s32.totalorder %s226, %s228
    %p235 = scmp.eq.s32.totalorder %s30, 1
    %p236 = por %p234, %p235
    %p237 = scmp.ne.s32.totalorder %s228, %s229
    %p238 = scmp.eq.s32.totalorder %s30, 0
    %p239 = por %p237, %p238
    %p240 = scmp.ne.s32.totalorder %s228, %s229
    %p241 = scmp.eq.s32.totalorder %s31, 1
    %p242 = por %p240, %p241
    %p244 = scmp.ne.s32.totalorder %s229, %s243
    %p245 = scmp.eq.s32.totalorder %s31, 0
    %p246 = por %p244, %p245
    %s248 = sadd.s32 %s247, 1
    %p251 = scmp.eq.s32.totalorder %s25, 1
    %p252 = scmp.ne.s32.totalorder %s247, %s249
    %p253 = scmp.eq.s32.totalorder %s25, 0
    %p254 = por %p252, %p253
    %p255 = scmp.ne.s32.totalorder %s247, %s249
    %p256 = scmp.eq.s32.totalorder %s30, 1
    %p257 = por %p255, %p256
    %p258 = scmp.ne.s32.totalorder %s249, %s250
    %p259 = scmp.eq.s32.totalorder %s30, 0
    %p260 = por %p258, %p259
    %p261 = scmp.ne.s32.totalorder %s249, %s250
    %p262 = scmp.eq.s32.totalorder %s31, 1
    %p263 = por %p261, %p262
    %p265 = scmp.ne.s32.totalorder %s250, %s264
    %p266 = scmp.eq.s32.totalorder %s31, 0
    %p267 = por %p265, %p266
    %s269 = sadd.s32 %s268, 1
    %p272 = scmp.eq.s32.totalorder %s25, 1
    %p273 = scmp.ne.s32.totalorder %s268, %s270
    %p274 = scmp.eq.s32.totalorder %s25, 0
    %p275 = por %p273, %p274
    %p276 = scmp.ne.s32.totalorder %s268, %s270
    %p277 = scmp.eq.s32.totalorder %s30, 1
    %p278 = por %p276, %p277
    %p279 = scmp.ne.s32.totalorder %s270, %s271
    %p280 = scmp.eq.s32.totalorder %s30, 0
    %p281 = por %p279, %p280
    %p282 = scmp.ne.s32.totalorder %s270, %s271
    %p283 = scmp.eq.s32.totalorder %s31, 1
    %p284 = por %p282, %p283
    %p286 = scmp.ne.s32.totalorder %s271, %s285
    %p287 = scmp.eq.s32.totalorder %s31, 0
    %p288 = por %p286, %p287
    %s290 = sadd.s32 %s289, 1
    %p293 = scmp.eq.s32.totalorder %s25, 1
    %p294 = scmp.ne.s32.totalorder %s289, %s291
    %p295 = scmp.eq.s32.totalorder %s25, 0
    %p296 = por %p294, %p295
    %p297 = scmp.ne.s32.totalorder %s289, %s291
    %p298 = scmp.eq.s32.totalorder %s30, 1
    %p299 = por %p297, %p298
    %p300 = scmp.ne.s32.totalorder %s291, %s292
    %p301 = scmp.eq.s32.totalorder %s30, 0
    %p302 = por %p300, %p301
    %p303 = scmp.ne.s32.totalorder %s291, %s292
    %p304 = scmp.eq.s32.totalorder %s31, 1
    %p305 = por %p303, %p304
    %p307 = scmp.ne.s32.totalorder %s292, %s306
    %p308 = scmp.eq.s32.totalorder %s31, 0
    %p309 = por %p307, %p308
    %s311 = sadd.s32 %s310, 1
    %p314 = scmp.eq.s32.totalorder %s25, 1
    %p315 = scmp.ne.s32.totalorder %s310, %s312
    %p316 = scmp.eq.s32.totalorder %s25, 0
    %p317 = por %p315, %p316
    %p318 = scmp.ne.s32.totalorder %s310, %s312
    %p319 = scmp.eq.s32.totalorder %s30, 1
    %p320 = por %p318, %p319
    %p321 = scmp.ne.s32.totalorder %s312, %s313
    %p322 = scmp.eq.s32.totalorder %s30, 0
    %p323 = por %p321, %p322
    %p324 = scmp.ne.s32.totalorder %s312, %s313
    %p325 = scmp.eq.s32.totalorder %s31, 1
    %p326 = por %p324, %p325
    %p328 = scmp.ne.s32.totalorder %s313, %s327
    %p329 = scmp.eq.s32.totalorder %s31, 0
    %p330 = por %p328, %p329
    %s332 = sadd.s32 %s331, 1
    %p335 = scmp.eq.s32.totalorder %s25, 1
    %p336 = scmp.ne.s32.totalorder %s331, %s333
    %p337 = scmp.eq.s32.totalorder %s25, 0
    %p338 = por %p336, %p337
    %p339 = scmp.ne.s32.totalorder %s331, %s333
    %p340 = scmp.eq.s32.totalorder %s30, 1
    %p341 = por %p339, %p340
    %p342 = scmp.ne.s32.totalorder %s333, %s334
    %p343 = scmp.eq.s32.totalorder %s30, 0
    %p344 = por %p342, %p343
    %p345 = scmp.ne.s32.totalorder %s333, %s334
    %p346 = scmp.eq.s32.totalorder %s31, 1
    %p347 = por %p345, %p346
    %p349 = scmp.ne.s32.totalorder %s334, %s348
    %p350 = scmp.eq.s32.totalorder %s31, 0
    %p351 = por %p349, %p350
    %s353 = sadd.s32 %s352, 1
    %p356 = scmp.eq.s32.totalorder %s25, 1
    %p357 = scmp.ne.s32.totalorder %s352, %s354
    %p358 = scmp.eq.s32.totalorder %s25, 0
    %p359 = por %p357, %p358
    %p360 = scmp.ne.s32.totalorder %s352, %s354
    %p361 = scmp.eq.s32.totalorder %s30, 1
    %p362 = por %p360, %p361
    %p363 = scmp.ne.s32.totalorder %s354, %s355
    %p364 = scmp.eq.s32.totalorder %s30, 0
    %p365 = por %p363, %p364
    %p366 = scmp.ne.s32.totalorder %s354, %s355
    %p367 = scmp.eq.s32.totalorder %s31, 1
    %p368 = por %p366, %p367
    %p370 = scmp.ne.s32.totalorder %s355, %s369
    %p371 = scmp.eq.s32.totalorder %s31, 0
    %p372 = por %p370, %p371
    %s374 = sadd.s32 %s373, 1
    %p377 = scmp.eq.s32.totalorder %s25, 1
    %p378 = scmp.ne.s32.totalorder %s373, %s375
    %p379 = scmp.eq.s32.totalorder %s25, 0
    %p380 = por %p378, %p379
    %p381 = scmp.ne.s32.totalorder %s373, %s375
    %p382 = scmp.eq.s32.totalorder %s30, 1
    %p383 = por %p381, %p382
    %p384 = scmp.ne.s32.totalorder %s375, %s376
    %p385 = scmp.eq.s32.totalorder %s30, 0
    %p386 = por %p384, %p385
    %p387 = scmp.ne.s32.totalorder %s375, %s376
    %p388 = scmp.eq.s32.totalorder %s31, 1
    %p389 = por %p387, %p388
    %p391 = scmp.ne.s32.totalorder %s376, %s390
    %p392 = scmp.eq.s32.totalorder %s31, 0
    %p393 = por %p391, %p392
    %s395 = sadd.s32 %s394, 1
    %p398 = scmp.eq.s32.totalorder %s25, 1
    %p399 = scmp.ne.s32.totalorder %s394, %s396
    %p400 = scmp.eq.s32.totalorder %s25, 0
    %p401 = por %p399, %p400
    %p402 = scmp.ne.s32.totalorder %s394, %s396
    %p403 = scmp.eq.s32.totalorder %s30, 1
    %p404 = por %p402, %p403
    %p405 = scmp.ne.s32.totalorder %s396, %s397
    %p406 = scmp.eq.s32.totalorder %s30, 0
    %p407 = por %p405, %p406
    %p408 = scmp.ne.s32.totalorder %s396, %s397
    %p409 = scmp.eq.s32.totalorder %s31, 1
    %p410 = por %p408, %p409
    %p412 = scmp.ne.s32.totalorder %s397, %s411
    %p413 = scmp.eq.s32.totalorder %s31, 0
    %p414 = por %p412, %p413
    %s416 = sadd.s32 %s415, 1
    %p419 = scmp.eq.s32.totalorder %s25, 1
    %p420 = scmp.ne.s32.totalorder %s415, %s417
    %p421 = scmp.eq.s32.totalorder %s25, 0
    %p422 = por %p420, %p421
    %p423 = scmp.ne.s32.totalorder %s415, %s417
    %p424 = scmp.eq.s32.totalorder %s30, 1
    %p425 = por %p423, %p424
    %p426 = scmp.ne.s32.totalorder %s417, %s418
    %p427 = scmp.eq.s32.totalorder %s30, 0
    %p428 = por %p426, %p427
    %p429 = scmp.ne.s32.totalorder %s417, %s418
    %p430 = scmp.eq.s32.totalorder %s31, 1
    %p431 = por %p429, %p430
    %p433 = scmp.ne.s32.totalorder %s418, %s432
    %p434 = scmp.eq.s32.totalorder %s31, 0
    %p435 = por %p433, %p434
    %s437 = sadd.s32 %s436, 1
    %p440 = scmp.eq.s32.totalorder %s25, 1
    %p441 = scmp.ne.s32.totalorder %s436, %s438
    %p442 = scmp.eq.s32.totalorder %s25, 0
    %p443 = por %p441, %p442
    %p444 = scmp.ne.s32.totalorder %s436, %s438
    %p445 = scmp.eq.s32.totalorder %s30, 1
    %p446 = por %p444, %p445
    %p447 = scmp.ne.s32.totalorder %s438, %s439
    %p448 = scmp.eq.s32.totalorder %s30, 0
    %p449 = por %p447, %p448
    %p450 = scmp.ne.s32.totalorder %s438, %s439
    %p451 = scmp.eq.s32.totalorder %s31, 1
    %p452 = por %p450, %p451
    %p454 = scmp.ne.s32.totalorder %s439, %s453
    %p455 = scmp.eq.s32.totalorder %s31, 0
    %p456 = por %p454, %p455
    %s457 = ssub.s32 %s25, %s32
    %p458 = scmp.eq.s32.totalorder %s457, 0
    %s460 = sadd.s32 %s459, 1
    %s461 = scalar_select %p458, %s459, %s460
    %p464 = pneg %p458
    %p465 = scmp.eq.s32.totalorder %s25, 1
    %p466 = por %p464, %p465
    %p467 = scmp.ne.s32.totalorder %s459, %s462
    %p468 = scmp.eq.s32.totalorder %s25, 0
    %p469 = por %p467, %p468
    %p470 = scmp.ne.s32.totalorder %s459, %s462
    %p471 = scmp.eq.s32.totalorder %s30, 1
    %p472 = por %p470, %p471
    %p473 = scmp.ne.s32.totalorder %s462, %s463
    %p474 = scmp.eq.s32.totalorder %s30, 0
    %p475 = por %p473, %p474
    %p476 = scmp.ne.s32.totalorder %s462, %s463
    %p477 = scmp.eq.s32.totalorder %s31, 1
    %p478 = por %p476, %p477
    %p480 = scmp.ne.s32.totalorder %s463, %s479
    %p481 = scmp.eq.s32.totalorder %s31, 0
    %p482 = por %p480, %p481
    %p483 = scmp.le.s32.totalorder 1, %s25
    %p484 = scmp.lt.s32.totalorder %s25, 3
    %p485 = pnand %p483, %p484
    %p486 = pneg %p485
    // Predicated region
    $region9: #{tpu_custom_call.1} parent=5 // pred_check
      _
    $region10: #{tpu_custom_call.1} parent=5 // pred_check_branch
      %488 = sbr.rel (%p485) target = $region12
    $region11: #{tpu_custom_call.1} parent=5 // pred_region
      %s489 = ssub.s32 %s25, 1
      // Predicated region
      $region13: #{tpu_custom_call.1} parent=11 // pred_check
        %p490 = pneg %p176
      $region14: #{tpu_custom_call.1} parent=11 // pred_check_branch
        %492 = sbr.rel (%p490) target = $region16
      $region15: #{tpu_custom_call.1} parent=11 // pred_region
        _
      $region16: #{tpu_custom_call.1} parent=11 // pred_fallthru
        _
      // Predicated region
      $region17: #{tpu_custom_call.1} parent=11 // pred_check
        %p493 = pneg %p197
      $region18: #{tpu_custom_call.1} parent=11 // pred_check_branch
        %495 = sbr.rel (%p493) target = $region20
      $region19: #{tpu_custom_call.1} parent=11 // pred_region
        _
      $region20: #{tpu_custom_call.1} parent=11 // pred_fallthru
        _
      // Predicated region
      $region21: #{tpu_custom_call.1} parent=11 // pred_check
        %p496 = pneg %p218
      $region22: #{tpu_custom_call.1} parent=11 // pred_check_branch
        %498 = sbr.rel (%p496) target = $region24
      $region23: #{tpu_custom_call.1} parent=11 // pred_region
        _
      $region24: #{tpu_custom_call.1} parent=11 // pred_fallthru
        _
      // Predicated region
      $region25: #{tpu_custom_call.1} parent=11 // pred_check
        %p499 = pneg %p239
      $region26: #{tpu_custom_call.1} parent=11 // pred_check_branch
        %501 = sbr.rel (%p499) target = $region28
      $region27: #{tpu_custom_call.1} parent=11 // pred_region
        _
      $region28: #{tpu_custom_call.1} parent=11 // pred_fallthru
        _
      // Predicated region
      $region29: #{tpu_custom_call.1} parent=11 // pred_check
        %p502 = pneg %p260
      $region30: #{tpu_custom_call.1} parent=11 // pred_check_branch
        %504 = sbr.rel (%p502) target = $region32
      $region31: #{tpu_custom_call.1} parent=11 // pred_region
        _
      $region32: #{tpu_custom_call.1} parent=11 // pred_fallthru
        _
      // Predicated region
      $region33: #{tpu_custom_call.1} parent=11 // pred_check
        %p505 = pneg %p281
      $region34: #{tpu_custom_call.1} parent=11 // pred_check_branch
        %507 = sbr.rel (%p505) target = $region36
      $region35: #{tpu_custom_call.1} parent=11 // pred_region
        _
      $region36: #{tpu_custom_call.1} parent=11 // pred_fallthru
        _
      // Predicated region
      $region37: #{tpu_custom_call.1} parent=11 // pred_check
        %p508 = pneg %p302
      $region38: #{tpu_custom_call.1} parent=11 // pred_check_branch
        %510 = sbr.rel (%p508) target = $region40
      $region39: #{tpu_custom_call.1} parent=11 // pred_region
        _
      $region40: #{tpu_custom_call.1} parent=11 // pred_fallthru
        _
      // Predicated region
      $region41: #{tpu_custom_call.1} parent=11 // pred_check
        %p511 = pneg %p323
      $region42: #{tpu_custom_call.1} parent=11 // pred_check_branch
        %513 = sbr.rel (%p511) target = $region44
      $region43: #{tpu_custom_call.1} parent=11 // pred_region
        _
      $region44: #{tpu_custom_call.1} parent=11 // pred_fallthru
        _
      // Predicated region
      $region45: #{tpu_custom_call.1} parent=11 // pred_check
        %p514 = pneg %p344
      $region46: #{tpu_custom_call.1} parent=11 // pred_check_branch
        %516 = sbr.rel (%p514) target = $region48
      $region47: #{tpu_custom_call.1} parent=11 // pred_region
        _
      $region48: #{tpu_custom_call.1} parent=11 // pred_fallthru
        _
      // Predicated region
      $region49: #{tpu_custom_call.1} parent=11 // pred_check
        %p517 = pneg %p365
      $region50: #{tpu_custom_call.1} parent=11 // pred_check_branch
        %519 = sbr.rel (%p517) target = $region52
      $region51: #{tpu_custom_call.1} parent=11 // pred_region
        _
      $region52: #{tpu_custom_call.1} parent=11 // pred_fallthru
        _
      // Predicated region
      $region53: #{tpu_custom_call.1} parent=11 // pred_check
        %p520 = pneg %p386
      $region54: #{tpu_custom_call.1} parent=11 // pred_check_branch
        %522 = sbr.rel (%p520) target = $region56
      $region55: #{tpu_custom_call.1} parent=11 // pred_region
        _
      $region56: #{tpu_custom_call.1} parent=11 // pred_fallthru
        _
      // Predicated region
      $region57: #{tpu_custom_call.1} parent=11 // pred_check
        %p523 = pneg %p407
      $region58: #{tpu_custom_call.1} parent=11 // pred_check_branch
        %525 = sbr.rel (%p523) target = $region60
      $region59: #{tpu_custom_call.1} parent=11 // pred_region
        _
      $region60: #{tpu_custom_call.1} parent=11 // pred_fallthru
        _
      // Predicated region
      $region61: #{tpu_custom_call.1} parent=11 // pred_check
        %p526 = pneg %p428
      $region62: #{tpu_custom_call.1} parent=11 // pred_check_branch
        %528 = sbr.rel (%p526) target = $region64
      $region63: #{tpu_custom_call.1} parent=11 // pred_region
        _
      $region64: #{tpu_custom_call.1} parent=11 // pred_fallthru
        _
      // Predicated region
      $region65: #{tpu_custom_call.1} parent=11 // pred_check
        %p529 = pneg %p449
      $region66: #{tpu_custom_call.1} parent=11 // pred_check_branch
        %531 = sbr.rel (%p529) target = $region68
      $region67: #{tpu_custom_call.1} parent=11 // pred_region
        _
      $region68: #{tpu_custom_call.1} parent=11 // pred_fallthru
        _
    $region12: #{tpu_custom_call.1} parent=5 // pred_fallthru
      _
    %p532 = scmp.lt.s32.totalorder %s25, 2
    // Predicated region
    $region69: #{tpu_custom_call.1} parent=5 // pred_check
      %p533 = pneg %p532
    $region70: #{tpu_custom_call.1} parent=5 // pred_check_branch
      %535 = sbr.rel (%p533) target = $region72
    $region71: #{tpu_custom_call.1} parent=5 // pred_region
      // Predicated region
      $region73: #{tpu_custom_call.1} parent=71 // pred_check
        %p536 = pneg %p45
      $region74: #{tpu_custom_call.1} parent=71 // pred_check_branch
        %538 = sbr.rel (%p536) target = $region76
      $region75: #{tpu_custom_call.1} parent=71 // pred_region
        %s539 = smul.u32 19, %s25
        %p540 = scmp.lt.s32.totalorder %s539, 37
        %s541 = scalar_select %p540, %s539, 37
        %s542 = smul.addr %s541, 4
        %s543 = scalar_lea.vmem %s0, %s542
        %s544 = smul.u32 19, %s25
      $region76: #{tpu_custom_call.1} parent=71 // pred_fallthru
        _
      // Predicated region
      $region77: #{tpu_custom_call.1} parent=71 // pred_check
        %p545 = pneg %p71
      $region78: #{tpu_custom_call.1} parent=71 // pred_check_branch
        %547 = sbr.rel (%p545) target = $region80
      $region79: #{tpu_custom_call.1} parent=71 // pred_region
        %s548 = smul.u32 19, %s25
        %p549 = scmp.lt.s32.totalorder %s548, 37
        %s550 = scalar_select %p549, %s548, 37
        %s551 = smul.addr %s550, 4
        %s552 = scalar_lea.vmem %s1, %s551
        %s553 = smul.u32 19, %s25
      $region80: #{tpu_custom_call.1} parent=71 // pred_fallthru
        _
      // Predicated region
      $region81: #{tpu_custom_call.1} parent=71 // pred_check
        %p554 = pneg %p97
      $region82: #{tpu_custom_call.1} parent=71 // pred_check_branch
        %556 = sbr.rel (%p554) target = $region84
      $region83: #{tpu_custom_call.1} parent=71 // pred_region
        %s557 = smul.u32 19, %s25
        %p558 = scmp.lt.s32.totalorder %s557, 37
        %s559 = scalar_select %p558, %s557, 37
        %s560 = smul.addr %s559, 2
        %s561 = smul.addr %s560, 4
        %s562 = scalar_lea.vmem %s2, %s561
        %s563 = smul.u32 19, %s25
      $region84: #{tpu_custom_call.1} parent=71 // pred_fallthru
        _
      // Predicated region
      $region85: #{tpu_custom_call.1} parent=71 // pred_check
        %p564 = pneg %p123
      $region86: #{tpu_custom_call.1} parent=71 // pred_check_branch
        %566 = sbr.rel (%p564) target = $region88
      $region87: #{tpu_custom_call.1} parent=71 // pred_region
        %s567 = smul.u32 19, %s25
        %p568 = scmp.lt.s32.totalorder %s567, 37
        %s569 = scalar_select %p568, %s567, 37
        %s570 = smul.addr %s569, 4
        %s571 = scalar_lea.vmem %s3, %s570
        %s572 = smul.u32 19, %s25
      $region88: #{tpu_custom_call.1} parent=71 // pred_fallthru
        _
      // Predicated region
      $region89: #{tpu_custom_call.1} parent=71 // pred_check
        %p573 = pneg %p149
      $region90: #{tpu_custom_call.1} parent=71 // pred_check_branch
        %575 = sbr.rel (%p573) target = $region92
      $region91: #{tpu_custom_call.1} parent=71 // pred_region
        %s576 = smul.u32 19, %s25
        %p577 = scmp.lt.s32.totalorder %s576, 37
        %s578 = scalar_select %p577, %s576, 37
        %s579 = smul.addr %s578, 4
        %s580 = scalar_lea.vmem %s4, %s579
        %s581 = smul.u32 19, %s25
      $region92: #{tpu_custom_call.1} parent=71 // pred_fallthru
        _
    $region72: #{tpu_custom_call.1} parent=5 // pred_fallthru
      _
    %p582 = scmp.le.s32.totalorder 1, %s25
    %p583 = scmp.lt.s32.totalorder %s25, 3
    %p584 = pnand %p582, %p583
    %p585 = pneg %p584
    // Predicated region
    $region93: #{tpu_custom_call.1} parent=5 // pred_check
      _
    $region94: #{tpu_custom_call.1} parent=5 // pred_check_branch
      %587 = sbr.rel (%p584) target = $region96
    $region95: #{tpu_custom_call.1} parent=5 // pred_region
      %s588 = ssub.s32 %s25, 1
      %s589 = smul.u32 19, %s30
      %p590 = scmp.lt.s32.totalorder %s589, 37
      %s591 = scalar_select %p590, %s589, 37
      %s592 = smul.addr %s591, 4
      %s593 = scalar_lea.vmem %s0, %s592
      %p594 = pneg %p51
      %p595 = pneg %p48
      %s596 = smul.u32 19, %s30
      %p597 = scmp.lt.s32.totalorder %s596, 37
      %s598 = scalar_select %p597, %s596, 37
      %s599 = smul.addr %s598, 4
      %s600 = scalar_lea.vmem %s1, %s599
      %p601 = pneg %p77
      %p602 = pneg %p74
      %s603 = smul.u32 19, %s30
      %p604 = scmp.lt.s32.totalorder %s603, 37
      %s605 = scalar_select %p604, %s603, 37
      %s606 = smul.addr %s605, 2
      %s607 = smul.addr %s606, 4
      %s608 = scalar_lea.vmem %s2, %s607
      %p609 = pneg %p103
      %p610 = pneg %p100
      %s611 = smul.u32 19, %s30
      %p612 = scmp.lt.s32.totalorder %s611, 37
      %s613 = scalar_select %p612, %s611, 37
      %s614 = smul.addr %s613, 4
      %s615 = scalar_lea.vmem %s3, %s614
      %p616 = pneg %p129
      %p617 = pneg %p126
      %s618 = smul.u32 19, %s30
      %p619 = scmp.lt.s32.totalorder %s618, 37
      %s620 = scalar_select %p619, %s618, 37
      %s621 = smul.addr %s620, 4
      %s622 = scalar_lea.vmem %s4, %s621
      %p623 = pneg %p155
      %p624 = pneg %p152
      %p625 = pneg %p176
      %p626 = pneg %p173
      %p627 = pneg %p197
      %p628 = pneg %p194
      %p629 = pneg %p218
      %p630 = pneg %p215
      %p631 = pneg %p239
      %p632 = pneg %p236
      %p633 = pneg %p260
      %p634 = pneg %p257
      %p635 = pneg %p281
      %p636 = pneg %p278
      %p637 = pneg %p302
      %p638 = pneg %p299
      %p639 = pneg %p323
      %p640 = pneg %p320
      %p641 = pneg %p344
      %p642 = pneg %p341
      %p643 = pneg %p365
      %p644 = pneg %p362
      %p645 = pneg %p386
      %p646 = pneg %p383
      %p647 = pneg %p407
      %p648 = pneg %p404
      %p649 = pneg %p428
      %p650 = pneg %p425
      %p651 = pneg %p449
      %p652 = pneg %p446
      %p653 = pneg %p475
      %p654 = pneg %p472
      %s655 = smul.u32 19, %s30
      %p656 = scmp.lt.s32.totalorder %s655, 37
      %s657 = scalar_select %p656, %s655, 37
      %s658 = smul.addr %s657, 8
      %s659 = scalar_lea.vmem %s19, %s658
      %s660 = smul.u32 19, %s30
      %p661 = scmp.lt.s32.totalorder %s660, 37
      %s662 = scalar_select %p661, %s660, 37
      %s663 = smul.addr %s662, 4
      %s664 = scalar_lea.vmem %s0, %s663
      %s665 = smul.u32 19, %s30
      %s666 = smul.u32 19, %s30
      %p667 = scmp.lt.s32.totalorder %s666, 37
      %s668 = scalar_select %p667, %s666, 37
      %s669 = smul.addr %s668, 4
      %s670 = scalar_lea.vmem %s1, %s669
      %s671 = smul.u32 19, %s30
      %s672 = smul.u32 19, %s30
      %p673 = scmp.lt.s32.totalorder %s672, 37
      %s674 = scalar_select %p673, %s672, 37
      %s675 = smul.addr %s674, 2
      %s676 = smul.addr %s675, 4
      %s677 = scalar_lea.vmem %s2, %s676
      %s678 = smul.u32 19, %s30
      %s679 = smul.u32 19, %s30
      %p680 = scmp.lt.s32.totalorder %s679, 37
      %s681 = scalar_select %p680, %s679, 37
      %s682 = smul.addr %s681, 4
      %s683 = scalar_lea.vmem %s3, %s682
      %s684 = smul.u32 19, %s30
      %s685 = smul.u32 19, %s30
      %p686 = scmp.lt.s32.totalorder %s685, 37
      %s687 = scalar_select %p686, %s685, 37
      %s688 = smul.addr %s687, 4
      %s689 = scalar_lea.vmem %s4, %s688
      %s690 = smul.u32 19, %s30
      %s691 = smul.u32 19, %s30
      %p692 = scmp.lt.s32.totalorder %s691, 37
      %s693 = scalar_select %p692, %s691, 37
      %s694 = smul.addr %s693, 8
      %s695 = scalar_lea.vmem %s19, %s694
      %s696 = smul.u32 19, %s30
      %v698 = vld [vmem:[%s664] sm:$0xf]
      %v699 = vld [vmem:[%s664 + $0x4] sm:$0xf]
      %v700 = vld [vmem:[%s664 + $0x8] sm:$0xf]
      %v701 = vld [vmem:[%s664 + $0xc] sm:$0xf]
      %v702 = vld [vmem:[%s664 + $0x10] sm:$0xf]
      %v703 = vld [vmem:[%s664 + $0x14] sm:$0xf]
      %v704 = vld [vmem:[%s664 + $0x18] sm:$0xf]
      %v705 = vld [vmem:[%s664 + $0x1c] sm:$0xf]
      %v706 = vld [vmem:[%s664 + $0x20] sm:$0xf]
      %v707 = vld [vmem:[%s664 + $0x24] sm:$0xf]
      %v708 = vld [vmem:[%s664 + $0x28] sm:$0xf]
      %v709 = vld [vmem:[%s664 + $0x2c] sm:$0xf]
      %v710 = vld [vmem:[%s664 + $0x30] sm:$0xf]
      %v711 = vld [vmem:[%s664 + $0x34] sm:$0xf]
      %v712 = vld [vmem:[%s664 + $0x38] sm:$0xf]
      %v713 = vld [vmem:[%s664 + $0x3c] sm:$0xf]
      %v714 = vld [vmem:[%s664 + $0x40] sm:$0xf]
      %v715 = vld [vmem:[%s664 + $0x44] sm:$0xf]
      %v716 = vld [vmem:[%s664 + $0x48] sm:$0xf]
      %v717 = vld [vmem:[%s5] sm:$0xf]
      %v718 = vld [vmem:[%s5 + $0x4] sm:$0xf]
      %v719 = vld [vmem:[%s5 + $0x8] sm:$0xf]
      %v720 = vld [vmem:[%s5 + $0xc] sm:$0xf]
      %v721 = vld [vmem:[%s670] sm:$0xf]
      %v722 = vld [vmem:[%s670 + $0x4] sm:$0xf]
      %v723 = vld [vmem:[%s670 + $0x8] sm:$0xf]
      %v724 = vld [vmem:[%s670 + $0xc] sm:$0xf]
      %v725 = vld [vmem:[%s670 + $0x10] sm:$0xf]
      %v726 = vld [vmem:[%s670 + $0x14] sm:$0xf]
      %v727 = vld [vmem:[%s670 + $0x18] sm:$0xf]
      %v728 = vld [vmem:[%s670 + $0x1c] sm:$0xf]
      %v729 = vld [vmem:[%s670 + $0x20] sm:$0xf]
      %v730 = vld [vmem:[%s670 + $0x24] sm:$0xf]
      %v731 = vld [vmem:[%s670 + $0x28] sm:$0xf]
      %v732 = vld [vmem:[%s670 + $0x2c] sm:$0xf]
      %v733 = vld [vmem:[%s670 + $0x30] sm:$0xf]
      %v734 = vld [vmem:[%s670 + $0x34] sm:$0xf]
      %v735 = vld [vmem:[%s670 + $0x38] sm:$0xf]
      %v736 = vld [vmem:[%s670 + $0x3c] sm:$0xf]
      %v737 = vld [vmem:[%s670 + $0x40] sm:$0xf]
      %v738 = vld [vmem:[%s670 + $0x44] sm:$0xf]
      %v739 = vld [vmem:[%s670 + $0x48] sm:$0xf]
      %v740 = vld [vmem:[%s6] sm:$0xf]
      %v741 = vld [vmem:[%s6 + $0x4] sm:$0xf]
      %v742 = vld [vmem:[%s6 + $0x8] sm:$0xf]
      %v743 = vld [vmem:[%s6 + $0xc] sm:$0xf]
      %v744 = vld [vmem:[%s6 + $0x10] sm:$0xf]
      %v745 = vld [vmem:[%s6 + $0x14] sm:$0xf]
      %v746 = vld [vmem:[%s6 + $0x18] sm:$0xf]
      %v747 = vld [vmem:[%s6 + $0x1c] sm:$0xf]
      %v767 = vunpack.c.l.b16 %v721
      %v768 = vunpack.c.l.b16 %v722
      %v769 = vunpack.c.l.b16 %v723
      %v770 = vunpack.c.l.b16 %v724
      %v771 = vunpack.c.l.b16 %v725
      %v772 = vunpack.c.l.b16 %v726
      %v773 = vunpack.c.l.b16 %v727
      %v774 = vunpack.c.l.b16 %v728
      %v775 = vunpack.c.l.b16 %v729
      %v776 = vunpack.c.l.b16 %v730
      %v777 = vunpack.c.l.b16 %v731
      %v778 = vunpack.c.l.b16 %v732
      %v779 = vunpack.c.l.b16 %v733
      %v780 = vunpack.c.l.b16 %v734
      %v781 = vunpack.c.l.b16 %v735
      %v782 = vunpack.c.l.b16 %v736
      %v783 = vunpack.c.l.b16 %v737
      %v784 = vunpack.c.l.b16 %v738
      %v785 = vunpack.c.l.b16 %v739
      %v786 = vpack.c.b16 %v768, %v767
      %v787 = vpack.c.b16 %v770, %v769
      %v788 = vpack.c.b16 %v772, %v771
      %v789 = vpack.c.b16 %v774, %v773
      %v790 = vpack.c.b16 %v776, %v775
      %v791 = vpack.c.b16 %v778, %v777
      %v792 = vpack.c.b16 %v780, %v779
      %v793 = vpack.c.b16 %v782, %v781
      %v794 = vpack.c.b16 %v784, %v783
      %v795 = vpack.c.b16 %v785, %v785
      %v804 = vunpack.c.l.b16 %v740
      %v805 = vunpack.c.l.b16 %v741
      %v806 = vunpack.c.l.b16 %v742
      %v807 = vunpack.c.l.b16 %v743
      %v808 = vunpack.c.l.b16 %v744
      %v809 = vunpack.c.l.b16 %v745
      %v810 = vunpack.c.l.b16 %v746
      %v811 = vunpack.c.l.b16 %v747
      %v812 = vpack.c.b16 %v805, %v804
      %v813 = vpack.c.b16 %v807, %v806
      %v814 = vpack.c.b16 %v809, %v808
      %v815 = vpack.c.b16 %v811, %v810
      %vm820 = vcmask 523264
      %v822 = vsel %vm820, %v786, 0
      %v825 = vsel %vm820, %v787, 0
      %v828 = vsel %vm820, %v788, 0
      %v831 = vsel %vm820, %v789, 0
      %v834 = vsel %vm820, %v790, 0
      %v837 = vsel %vm820, %v791, 0
      %v840 = vsel %vm820, %v792, 0
      %v843 = vsel %vm820, %v793, 0
      %v846 = vsel %vm820, %v794, 0
      %v849 = vsel %vm820, %v795, 0
      %851 = vmatprep.subr.bf16.mxu0 0
      %852 = vmatpush1.bf16.msra.mxu0 0
      %853 = vmatprep.subr.bf16.mxu0 0
      %854 = vmatpush1.bf16.msra.mxu0 0
      %855 = vmatprep.subr.bf16.mxu0 0
      %856 = vmatpush1.bf16.msra.mxu0 0
      %857 = vmatprep.subr.bf16.mxu0 0
      %858 = vmatpush1.bf16.msra.mxu0 0
      %859 = vmatprep.subr.bf16.mxu0 0
      %860 = vmatpush1.bf16.msra.mxu0 %v815
      %861 = vmatprep.subr.bf16.mxu0 0
      %862 = vmatpush1.bf16.msra.mxu0 %v814
      %863 = vmatprep.subr.bf16.mxu0 0
      %864 = vmatpush1.bf16.msra.mxu0 %v813
      %865 = vmatprep.subr.bf16.mxu0 0
      %866 = vmatpush1.bf16.msra.mxu0 %v812
      %867 = vmatprep.subr.bf16.mxu0 0
      %868 = vmatpush2.bf16.msra.mxu0 0
      %869 = vmatprep.subr.bf16.mxu0 0
      %870 = vmatpush2.bf16.msra.mxu0 0
      %871 = vmatprep.subr.bf16.mxu0 0
      %872 = vmatpush2.bf16.msra.mxu0 0
      %873 = vmatprep.subr.bf16.mxu0 0
      %874 = vmatpush2.bf16.msra.mxu0 0
      %875 = vmatprep.subr.bf16.mxu0 0
      %876 = vmatpush2.bf16.msra.mxu0 0
      %877 = vmatprep.subr.bf16.mxu0 0
      %878 = vmatpush2.bf16.msra.mxu0 0
      %879 = vmatprep.subr.bf16.mxu0 0
      %880 = vmatpush2.bf16.msra.mxu0 0
      %881 = vmatprep.subr.bf16.mxu0 0
      %882 = vmatpush2.bf16.msra.mxu0 0
      %883 = vmatprep.mubr.bf16.mxu0 0
      %884 = vmatmul.mubr.bf16.gmra.mxu0 %v822
      %v885 = vpop.f32.mrf.mxu0
      %v886 = vadd.f32 0.0, %v885
      %v887 = vpop.f32.mrf.mxu0
      %v888 = vpop.f32.mrf.mxu0
      %v889 = vadd.f32 0.0, %v888
      %v890 = vpop.f32.mrf.mxu0
      %891 = vmatprep.mubr.bf16.mxu0 0
      %892 = vmatmul.mubr.bf16.gmra.mxu0 %v825
      %v893 = vpop.f32.mrf.mxu0
      %v894 = vadd.f32 0.0, %v893
      %v895 = vpop.f32.mrf.mxu0
      %v896 = vpop.f32.mrf.mxu0
      %v897 = vadd.f32 0.0, %v896
      %v898 = vpop.f32.mrf.mxu0
      %899 = vmatprep.mubr.bf16.mxu0 0
      %900 = vmatmul.mubr.bf16.gmra.mxu0 %v828
      %v901 = vpop.f32.mrf.mxu0
      %v902 = vadd.f32 0.0, %v901
      %v903 = vpop.f32.mrf.mxu0
      %v904 = vpop.f32.mrf.mxu0
      %v905 = vadd.f32 0.0, %v904
      %v906 = vpop.f32.mrf.mxu0
      %907 = vmatprep.mubr.bf16.mxu0 0
      %908 = vmatmul.mubr.bf16.gmra.mxu0 %v831
      %v909 = vpop.f32.mrf.mxu0
      %v910 = vadd.f32 0.0, %v909
      %v911 = vpop.f32.mrf.mxu0
      %v912 = vpop.f32.mrf.mxu0
      %v913 = vadd.f32 0.0, %v912
      %v914 = vpop.f32.mrf.mxu0
      %915 = vmatprep.mubr.bf16.mxu0 0
      %916 = vmatmul.mubr.bf16.gmra.mxu0 %v834
      %v917 = vpop.f32.mrf.mxu0
      %v918 = vadd.f32 0.0, %v917
      %v919 = vpop.f32.mrf.mxu0
      %v920 = vpop.f32.mrf.mxu0
      %v921 = vadd.f32 0.0, %v920
      %v922 = vpop.f32.mrf.mxu0
      %923 = vmatprep.mubr.bf16.mxu0 0
      %924 = vmatmul.mubr.bf16.gmra.mxu0 %v837
      %v925 = vpop.f32.mrf.mxu0
      %v926 = vadd.f32 0.0, %v925
      %v927 = vpop.f32.mrf.mxu0
      %v928 = vpop.f32.mrf.mxu0
      %v929 = vadd.f32 0.0, %v928
      %v930 = vpop.f32.mrf.mxu0
      %931 = vmatprep.mubr.bf16.mxu0 0
      %932 = vmatmul.mubr.bf16.gmra.mxu0 %v840
      %v933 = vpop.f32.mrf.mxu0
      %v934 = vadd.f32 0.0, %v933
      %v935 = vpop.f32.mrf.mxu0
      %v936 = vpop.f32.mrf.mxu0
      %v937 = vadd.f32 0.0, %v936
      %v938 = vpop.f32.mrf.mxu0
      %939 = vmatprep.mubr.bf16.mxu0 0
      %940 = vmatmul.mubr.bf16.gmra.mxu0 %v843
      %v941 = vpop.f32.mrf.mxu0
      %v942 = vadd.f32 0.0, %v941
      %v943 = vpop.f32.mrf.mxu0
      %v944 = vpop.f32.mrf.mxu0
      %v945 = vadd.f32 0.0, %v944
      %v946 = vpop.f32.mrf.mxu0
      %947 = vmatprep.mubr.bf16.mxu0 0
      %948 = vmatmul.mubr.bf16.gmra.mxu0 %v846
      %v949 = vpop.f32.mrf.mxu0
      %v950 = vadd.f32 0.0, %v949
      %v951 = vpop.f32.mrf.mxu0
      %v952 = vpop.f32.mrf.mxu0
      %v953 = vadd.f32 0.0, %v952
      %v954 = vpop.f32.mrf.mxu0
      %955 = vmatprep.mubr.bf16.mxu0 0
      %956 = vmatmul.mubr.bf16.gmra.mxu0 %v849
      %v957 = vpop.f32.mrf.mxu0
      %v958 = vadd.f32 0.0, %v957
      %v959 = vpop.f32.mrf.mxu0
      %v960 = vpop.f32.mrf.mxu0
      %v961 = vpop.f32.mrf.mxu0
      %962 = vdwg.mxu0
      %v982 = vunpack.c.l.b16 %v698
      %v983 = vunpack.c.l.b16 %v699
      %v984 = vunpack.c.l.b16 %v700
      %v985 = vunpack.c.l.b16 %v701
      %v986 = vunpack.c.l.b16 %v702
      %v987 = vunpack.c.l.b16 %v703
      %v988 = vunpack.c.l.b16 %v704
      %v989 = vunpack.c.l.b16 %v705
      %v990 = vunpack.c.l.b16 %v706
      %v991 = vunpack.c.l.b16 %v707
      %v992 = vunpack.c.l.b16 %v708
      %v993 = vunpack.c.l.b16 %v709
      %v994 = vunpack.c.l.b16 %v710
      %v995 = vunpack.c.l.b16 %v711
      %v996 = vunpack.c.l.b16 %v712
      %v997 = vunpack.c.l.b16 %v713
      %v998 = vunpack.c.l.b16 %v714
      %v999 = vunpack.c.l.b16 %v715
      %v1000 = vunpack.c.l.b16 %v716
      %v1001 = vpack.c.b16 %v983, %v982
      %v1002 = vpack.c.b16 %v985, %v984
      %v1003 = vpack.c.b16 %v987, %v986
      %v1004 = vpack.c.b16 %v989, %v988
      %v1005 = vpack.c.b16 %v991, %v990
      %v1006 = vpack.c.b16 %v993, %v992
      %v1007 = vpack.c.b16 %v995, %v994
      %v1008 = vpack.c.b16 %v997, %v996
      %v1009 = vpack.c.b16 %v999, %v998
      %v1010 = vpack.c.b16 %v1000, %v1000
      %v1015 = vunpack.c.l.b16 %v717
      %v1016 = vunpack.c.l.b16 %v718
      %v1017 = vunpack.c.l.b16 %v719
      %v1018 = vunpack.c.l.b16 %v720
      %v1019 = vpack.c.b16 %v1016, %v1015
      %v1020 = vpack.c.b16 %v1018, %v1017
      %vm1023 = vcmask 261120
      %v1025 = vsel %vm1023, %v1001, 0
      %v1028 = vsel %vm1023, %v1002, 0
      %v1031 = vsel %vm1023, %v1003, 0
      %v1034 = vsel %vm1023, %v1004, 0
      %v1037 = vsel %vm1023, %v1005, 0
      %v1040 = vsel %vm1023, %v1006, 0
      %v1043 = vsel %vm1023, %v1007, 0
      %v1046 = vsel %vm1023, %v1008, 0
      %v1049 = vsel %vm1023, %v1009, 0
      %v1052 = vsel %vm1023, %v1010, 0
      %1054 = vmatprep.subr.bf16.mxu0 0
      %1055 = vmatpush1.bf16.msra.mxu0 0
      %1056 = vmatprep.subr.bf16.mxu0 0
      %1057 = vmatpush1.bf16.msra.mxu0 0
      %1058 = vmatprep.subr.bf16.mxu0 0
      %1059 = vmatpush1.bf16.msra.mxu0 0
      %1060 = vmatprep.subr.bf16.mxu0 0
      %1061 = vmatpush1.bf16.msra.mxu0 0
      %1062 = vmatprep.subr.bf16.mxu0 0
      %1063 = vmatpush1.bf16.msra.mxu0 0
      %1064 = vmatprep.subr.bf16.mxu0 0
      %1065 = vmatpush1.bf16.msra.mxu0 0
      %1066 = vmatprep.subr.bf16.mxu0 0
      %1067 = vmatpush1.bf16.msra.mxu0 %v1020
      %1068 = vmatprep.subr.bf16.mxu0 0
      %1069 = vmatpush1.bf16.msra.mxu0 %v1019
      %1070 = vmatprep.subr.bf16.mxu0 0
      %1071 = vmatpush2.bf16.msra.mxu0 0
      %1072 = vmatprep.subr.bf16.mxu0 0
      %1073 = vmatpush2.bf16.msra.mxu0 0
      %1074 = vmatprep.subr.bf16.mxu0 0
      %1075 = vmatpush2.bf16.msra.mxu0 0
      %1076 = vmatprep.subr.bf16.mxu0 0
      %1077 = vmatpush2.bf16.msra.mxu0 0
      %1078 = vmatprep.subr.bf16.mxu0 0
      %1079 = vmatpush2.bf16.msra.mxu0 0
      %1080 = vmatprep.subr.bf16.mxu0 0
      %1081 = vmatpush2.bf16.msra.mxu0 0
      %1082 = vmatprep.subr.bf16.mxu0 0
      %1083 = vmatpush2.bf16.msra.mxu0 0
      %1084 = vmatprep.subr.bf16.mxu0 0
      %1085 = vmatpush2.bf16.msra.mxu0 0
      %1086 = vmatprep.mubr.bf16.mxu0 0
      %1087 = vmatmul.mubr.bf16.gmra.mxu0 %v1025
      %v1088 = vpop.f32.mrf.mxu0
      %v1089 = vadd.f32 %v886, %v1088
      %v1090 = vpop.f32.mrf.mxu0
      %v1091 = vpop.f32.mrf.mxu0
      %v1092 = vadd.f32 %v889, %v1091
      %v1093 = vpop.f32.mrf.mxu0
      %1094 = vmatprep.mubr.bf16.mxu0 0
      %1095 = vmatmul.mubr.bf16.gmra.mxu0 %v1028
      %v1096 = vpop.f32.mrf.mxu0
      %v1097 = vadd.f32 %v894, %v1096
      %v1098 = vpop.f32.mrf.mxu0
      %v1099 = vpop.f32.mrf.mxu0
      %v1100 = vadd.f32 %v897, %v1099
      %v1101 = vpop.f32.mrf.mxu0
      %1102 = vmatprep.mubr.bf16.mxu0 0
      %1103 = vmatmul.mubr.bf16.gmra.mxu0 %v1031
      %v1104 = vpop.f32.mrf.mxu0
      %v1105 = vadd.f32 %v902, %v1104
      %v1106 = vpop.f32.mrf.mxu0
      %v1107 = vpop.f32.mrf.mxu0
      %v1108 = vadd.f32 %v905, %v1107
      %v1109 = vpop.f32.mrf.mxu0
      %1110 = vmatprep.mubr.bf16.mxu0 0
      %1111 = vmatmul.mubr.bf16.gmra.mxu0 %v1034
      %v1112 = vpop.f32.mrf.mxu0
      %v1113 = vadd.f32 %v910, %v1112
      %v1114 = vpop.f32.mrf.mxu0
      %v1115 = vpop.f32.mrf.mxu0
      %v1116 = vadd.f32 %v913, %v1115
      %v1117 = vpop.f32.mrf.mxu0
      %1118 = vmatprep.mubr.bf16.mxu0 0
      %1119 = vmatmul.mubr.bf16.gmra.mxu0 %v1037
      %v1120 = vpop.f32.mrf.mxu0
      %v1121 = vadd.f32 %v918, %v1120
      %v1122 = vpop.f32.mrf.mxu0
      %v1123 = vpop.f32.mrf.mxu0
      %v1124 = vadd.f32 %v921, %v1123
      %v1125 = vpop.f32.mrf.mxu0
      %1126 = vmatprep.mubr.bf16.mxu0 0
      %1127 = vmatmul.mubr.bf16.gmra.mxu0 %v1040
      %v1128 = vpop.f32.mrf.mxu0
      %v1129 = vadd.f32 %v926, %v1128
      %v1130 = vpop.f32.mrf.mxu0
      %v1131 = vpop.f32.mrf.mxu0
      %v1132 = vadd.f32 %v929, %v1131
      %v1133 = vpop.f32.mrf.mxu0
      %1134 = vmatprep.mubr.bf16.mxu0 0
      %1135 = vmatmul.mubr.bf16.gmra.mxu0 %v1043
      %v1136 = vpop.f32.mrf.mxu0
      %v1137 = vadd.f32 %v934, %v1136
      %v1138 = vpop.f32.mrf.mxu0
      %v1139 = vpop.f32.mrf.mxu0
      %v1140 = vadd.f32 %v937, %v1139
      %v1141 = vpop.f32.mrf.mxu0
      %1142 = vmatprep.mubr.bf16.mxu0 0
      %1143 = vmatmul.mubr.bf16.gmra.mxu0 %v1046
      %v1144 = vpop.f32.mrf.mxu0
      %v1145 = vadd.f32 %v942, %v1144
      %v1146 = vpop.f32.mrf.mxu0
      %v1147 = vpop.f32.mrf.mxu0
      %v1148 = vadd.f32 %v945, %v1147
      %v1149 = vpop.f32.mrf.mxu0
      %1150 = vmatprep.mubr.bf16.mxu0 0
      %1151 = vmatmul.mubr.bf16.gmra.mxu0 %v1049
      %v1152 = vpop.f32.mrf.mxu0
      %v1153 = vadd.f32 %v950, %v1152
      %v1154 = vpop.f32.mrf.mxu0
      %v1155 = vpop.f32.mrf.mxu0
      %v1156 = vadd.f32 %v953, %v1155
      %v1157 = vpop.f32.mrf.mxu0
      %1158 = vmatprep.mubr.bf16.mxu0 0
      %1159 = vmatmul.mubr.bf16.gmra.mxu0 %v1052
      %v1160 = vpop.f32.mrf.mxu0
      %v1161 = vadd.f32 %v958, %v1160
      %v1162 = vpop.f32.mrf.mxu0
      %v1163 = vpop.f32.mrf.mxu0
      %v1164 = vpop.f32.mrf.mxu0
      %1165 = vdwg.mxu0
      %v1166 = vld [vmem:[%s7] sm:$0x1]
      %v1168 = vlaneseq
      %v1169 = vshrl.u32 %v1168, 7
      %v1170 = vsub.s32 0, %v1169
      %v1171 = vrot.slane %v1166, %v1170
      %v1173 = vadd.f32 %v1089, %v1171
      %v1174 = vadd.f32 %v1092, %v1171
      %v1175 = vadd.f32 %v1097, %v1171
      %v1176 = vadd.f32 %v1100, %v1171
      %v1177 = vadd.f32 %v1105, %v1171
      %v1178 = vadd.f32 %v1108, %v1171
      %v1179 = vadd.f32 %v1113, %v1171
      %v1180 = vadd.f32 %v1116, %v1171
      %v1181 = vadd.f32 %v1121, %v1171
      %v1182 = vadd.f32 %v1124, %v1171
      %v1183 = vadd.f32 %v1129, %v1171
      %v1184 = vadd.f32 %v1132, %v1171
      %v1185 = vadd.f32 %v1137, %v1171
      %v1186 = vadd.f32 %v1140, %v1171
      %v1187 = vadd.f32 %v1145, %v1171
      %v1188 = vadd.f32 %v1148, %v1171
      %v1189 = vadd.f32 %v1153, %v1171
      %v1190 = vadd.f32 %v1156, %v1171
      %v1191 = vadd.f32 %v1161, %v1171
      %v1192 = vmax.f32 %v1173, 0.0
      %v1193 = vmax.f32 %v1174, 0.0
      %v1194 = vmax.f32 %v1175, 0.0
      %v1195 = vmax.f32 %v1176, 0.0
      %v1196 = vmax.f32 %v1177, 0.0
      %v1197 = vmax.f32 %v1178, 0.0
      %v1198 = vmax.f32 %v1179, 0.0
      %v1199 = vmax.f32 %v1180, 0.0
      %v1200 = vmax.f32 %v1181, 0.0
      %v1201 = vmax.f32 %v1182, 0.0
      %v1202 = vmax.f32 %v1183, 0.0
      %v1203 = vmax.f32 %v1184, 0.0
      %v1204 = vmax.f32 %v1185, 0.0
      %v1205 = vmax.f32 %v1186, 0.0
      %v1206 = vmax.f32 %v1187, 0.0
      %v1207 = vmax.f32 %v1188, 0.0
      %v1208 = vmax.f32 %v1189, 0.0
      %v1209 = vmax.f32 %v1190, 0.0
      %v1210 = vmax.f32 %v1191, 0.0
      %v1211 = vpack.c.bf16 %v1193, %v1192
      %v1212 = vpack.c.bf16 %v1195, %v1194
      %v1213 = vpack.c.bf16 %v1197, %v1196
      %v1214 = vpack.c.bf16 %v1199, %v1198
      %v1215 = vpack.c.bf16 %v1201, %v1200
      %v1216 = vpack.c.bf16 %v1203, %v1202
      %v1217 = vpack.c.bf16 %v1205, %v1204
      %v1218 = vpack.c.bf16 %v1207, %v1206
      %v1219 = vpack.c.bf16 %v1209, %v1208
      %v1220 = vpack.c.bf16 %v1210, %v1210
      %v1221 = vld [vmem:[%s8] sm:$0xf]
      %v1222 = vld [vmem:[%s8 + $0x4] sm:$0xf]
      %v1223 = vld [vmem:[%s8 + $0x8] sm:$0xf]
      %v1224 = vld [vmem:[%s8 + $0xc] sm:$0xf]
      %v1225 = vld [vmem:[%s8 + $0x10] sm:$0xf]
      %v1226 = vld [vmem:[%s8 + $0x14] sm:$0xf]
      %v1227 = vld [vmem:[%s8 + $0x18] sm:$0xf]
      %v1228 = vld [vmem:[%s8 + $0x1c] sm:$0xf]
      %v1229 = vld [vmem:[%s677] sm:$0xff]
      %v1230 = vld [vmem:[%s677 + $0x8] sm:$0xff]
      %v1231 = vld [vmem:[%s677 + $0x10] sm:$0xff]
      %v1232 = vld [vmem:[%s677 + $0x18] sm:$0xff]
      %v1233 = vld [vmem:[%s677 + $0x20] sm:$0xff]
      %v1234 = vld [vmem:[%s677 + $0x28] sm:$0xff]
      %v1235 = vld [vmem:[%s677 + $0x30] sm:$0xff]
      %v1236 = vld [vmem:[%s677 + $0x38] sm:$0xff]
      %v1237 = vld [vmem:[%s677 + $0x40] sm:$0xff]
      %v1238 = vld [vmem:[%s677 + $0x48] sm:$0xff]
      %v1239 = vld [vmem:[%s677 + $0x50] sm:$0xff]
      %v1240 = vld [vmem:[%s677 + $0x58] sm:$0xff]
      %v1241 = vld [vmem:[%s677 + $0x60] sm:$0xff]
      %v1242 = vld [vmem:[%s677 + $0x68] sm:$0xff]
      %v1243 = vld [vmem:[%s677 + $0x70] sm:$0xff]
      %v1244 = vld [vmem:[%s677 + $0x78] sm:$0xff]
      %v1245 = vld [vmem:[%s677 + $0x80] sm:$0xff]
      %v1246 = vld [vmem:[%s677 + $0x88] sm:$0xff]
      %v1247 = vld [vmem:[%s677 + $0x90] sm:$0xff]
      %v1248 = vld [vmem:[%s9] sm:$0xf]
      %v1249 = vld [vmem:[%s9 + $0x4] sm:$0xf]
      %v1250 = vld [vmem:[%s9 + $0x8] sm:$0xf]
      %v1251 = vld [vmem:[%s9 + $0xc] sm:$0xf]
      %v1252 = vld [vmem:[%s9 + $0x10] sm:$0xf]
      %v1253 = vld [vmem:[%s9 + $0x14] sm:$0xf]
      %v1254 = vld [vmem:[%s9 + $0x18] sm:$0xf]
      %v1255 = vld [vmem:[%s9 + $0x1c] sm:$0xf]
      %v1256 = vld [vmem:[%s9 + $0x20] sm:$0xf]
      %v1257 = vld [vmem:[%s9 + $0x24] sm:$0xf]
      %v1258 = vld [vmem:[%s9 + $0x28] sm:$0xf]
      %v1259 = vld [vmem:[%s9 + $0x2c] sm:$0xf]
      %v1260 = vld [vmem:[%s9 + $0x30] sm:$0xf]
      %v1261 = vld [vmem:[%s9 + $0x34] sm:$0xf]
      %v1262 = vld [vmem:[%s9 + $0x38] sm:$0xf]
      %v1263 = vld [vmem:[%s9 + $0x3c] sm:$0xf]
      %v1264 = vld [vmem:[%s9 + $0x40] sm:$0xf]
      %v1265 = vld [vmem:[%s9 + $0x44] sm:$0xf]
      %v1266 = vld [vmem:[%s9 + $0x48] sm:$0xf]
      %v1267 = vld [vmem:[%s9 + $0x4c] sm:$0xf]
      %v1268 = vld [vmem:[%s9 + $0x50] sm:$0xf]
      %v1269 = vld [vmem:[%s9 + $0x54] sm:$0xf]
      %v1270 = vld [vmem:[%s9 + $0x58] sm:$0xf]
      %v1271 = vld [vmem:[%s9 + $0x5c] sm:$0xf]
      %v1272 = vld [vmem:[%s9 + $0x60] sm:$0xf]
      %v1273 = vld [vmem:[%s9 + $0x64] sm:$0xf]
      %v1274 = vld [vmem:[%s9 + $0x68] sm:$0xf]
      %v1275 = vld [vmem:[%s9 + $0x6c] sm:$0xf]
      %v1276 = vld [vmem:[%s9 + $0x70] sm:$0xf]
      %v1277 = vld [vmem:[%s9 + $0x74] sm:$0xf]
      %v1278 = vld [vmem:[%s9 + $0x78] sm:$0xf]
      %v1279 = vld [vmem:[%s9 + $0x7c] sm:$0xf]
      %v1299 = vunpack.c.l.b16 %v1229
      %v1300 = vunpack.c.h.b16 %v1229
      %v1301 = vunpack.c.l.b16 %v1230
      %v1302 = vunpack.c.h.b16 %v1230
      %v1303 = vunpack.c.l.b16 %v1231
      %v1304 = vunpack.c.h.b16 %v1231
      %v1305 = vunpack.c.l.b16 %v1232
      %v1306 = vunpack.c.h.b16 %v1232
      %v1307 = vunpack.c.l.b16 %v1233
      %v1308 = vunpack.c.h.b16 %v1233
      %v1309 = vunpack.c.l.b16 %v1234
      %v1310 = vunpack.c.h.b16 %v1234
      %v1311 = vunpack.c.l.b16 %v1235
      %v1312 = vunpack.c.h.b16 %v1235
      %v1313 = vunpack.c.l.b16 %v1236
      %v1314 = vunpack.c.h.b16 %v1236
      %v1315 = vunpack.c.l.b16 %v1237
      %v1316 = vunpack.c.h.b16 %v1237
      %v1317 = vunpack.c.l.b16 %v1238
      %v1318 = vunpack.c.h.b16 %v1238
      %v1319 = vunpack.c.l.b16 %v1239
      %v1320 = vunpack.c.h.b16 %v1239
      %v1321 = vunpack.c.l.b16 %v1240
      %v1322 = vunpack.c.h.b16 %v1240
      %v1323 = vunpack.c.l.b16 %v1241
      %v1324 = vunpack.c.h.b16 %v1241
      %v1325 = vunpack.c.l.b16 %v1242
      %v1326 = vunpack.c.h.b16 %v1242
      %v1327 = vunpack.c.l.b16 %v1243
      %v1328 = vunpack.c.h.b16 %v1243
      %v1329 = vunpack.c.l.b16 %v1244
      %v1330 = vunpack.c.h.b16 %v1244
      %v1331 = vunpack.c.l.b16 %v1245
      %v1332 = vunpack.c.h.b16 %v1245
      %v1333 = vunpack.c.l.b16 %v1246
      %v1334 = vunpack.c.h.b16 %v1246
      %v1335 = vunpack.c.l.b16 %v1247
      %v1336 = vunpack.c.h.b16 %v1247
      %v1337 = vpack.c.b16 %v1301, %v1299
      %v1338 = vpack.c.b16 %v1302, %v1300
      %v1339 = vpack.c.b16 %v1305, %v1303
      %v1340 = vpack.c.b16 %v1306, %v1304
      %v1341 = vpack.c.b16 %v1309, %v1307
      %v1342 = vpack.c.b16 %v1310, %v1308
      %v1343 = vpack.c.b16 %v1313, %v1311
      %v1344 = vpack.c.b16 %v1314, %v1312
      %v1345 = vpack.c.b16 %v1317, %v1315
      %v1346 = vpack.c.b16 %v1318, %v1316
      %v1347 = vpack.c.b16 %v1321, %v1319
      %v1348 = vpack.c.b16 %v1322, %v1320
      %v1349 = vpack.c.b16 %v1325, %v1323
      %v1350 = vpack.c.b16 %v1326, %v1324
      %v1351 = vpack.c.b16 %v1329, %v1327
      %v1352 = vpack.c.b16 %v1330, %v1328
      %v1353 = vpack.c.b16 %v1333, %v1331
      %v1354 = vpack.c.b16 %v1334, %v1332
      %v1355 = vpack.c.b16 %v1335, %v1335
      %v1356 = vpack.c.b16 %v1336, %v1336
      %v1409 = vunpack.c.l.b16 %v1248
      %v1410 = vunpack.c.l.b16 %v1249
      %v1411 = vunpack.c.l.b16 %v1250
      %v1412 = vunpack.c.l.b16 %v1251
      %v1413 = vunpack.c.l.b16 %v1252
      %v1414 = vunpack.c.l.b16 %v1253
      %v1415 = vunpack.c.l.b16 %v1254
      %v1416 = vunpack.c.l.b16 %v1255
      %v1417 = vunpack.c.l.b16 %v1256
      %v1418 = vunpack.c.l.b16 %v1257
      %v1419 = vunpack.c.l.b16 %v1258
      %v1420 = vunpack.c.l.b16 %v1259
      %v1421 = vunpack.c.l.b16 %v1260
      %v1422 = vunpack.c.l.b16 %v1261
      %v1423 = vunpack.c.l.b16 %v1262
      %v1424 = vunpack.c.l.b16 %v1263
      %v1425 = vunpack.c.l.b16 %v1264
      %v1426 = vunpack.c.l.b16 %v1265
      %v1427 = vunpack.c.l.b16 %v1266
      %v1428 = vunpack.c.l.b16 %v1267
      %v1429 = vunpack.c.l.b16 %v1268
      %v1430 = vunpack.c.l.b16 %v1269
      %v1431 = vunpack.c.l.b16 %v1270
      %v1432 = vunpack.c.l.b16 %v1271
      %v1433 = vunpack.c.l.b16 %v1272
      %v1434 = vunpack.c.l.b16 %v1273
      %v1435 = vunpack.c.l.b16 %v1274
      %v1436 = vunpack.c.l.b16 %v1275
      %v1437 = vunpack.c.l.b16 %v1276
      %v1438 = vunpack.c.l.b16 %v1277
      %v1439 = vunpack.c.l.b16 %v1278
      %v1440 = vunpack.c.l.b16 %v1279
      %v1441 = vpack.c.b16 %v1410, %v1409
      %v1442 = vpack.c.b16 %v1412, %v1411
      %v1443 = vpack.c.b16 %v1414, %v1413
      %v1444 = vpack.c.b16 %v1416, %v1415
      %v1445 = vpack.c.b16 %v1418, %v1417
      %v1446 = vpack.c.b16 %v1420, %v1419
      %v1447 = vpack.c.b16 %v1422, %v1421
      %v1448 = vpack.c.b16 %v1424, %v1423
      %v1449 = vpack.c.b16 %v1426, %v1425
      %v1450 = vpack.c.b16 %v1428, %v1427
      %v1451 = vpack.c.b16 %v1430, %v1429
      %v1452 = vpack.c.b16 %v1432, %v1431
      %v1453 = vpack.c.b16 %v1434, %v1433
      %v1454 = vpack.c.b16 %v1436, %v1435
      %v1455 = vpack.c.b16 %v1438, %v1437
      %v1456 = vpack.c.b16 %v1440, %v1439
      %1473 = vmatprep.subr.bf16.mxu0 0
      %1474 = vmatpush1.bf16.msra.mxu0 %v1448
      %1475 = vmatprep.subr.bf16.mxu0 0
      %1476 = vmatpush1.bf16.msra.mxu0 %v1447
      %1477 = vmatprep.subr.bf16.mxu0 0
      %1478 = vmatpush1.bf16.msra.mxu0 %v1446
      %1479 = vmatprep.subr.bf16.mxu0 0
      %1480 = vmatpush1.bf16.msra.mxu0 %v1445
      %1481 = vmatprep.subr.bf16.mxu0 0
      %1482 = vmatpush1.bf16.msra.mxu0 %v1444
      %1483 = vmatprep.subr.bf16.mxu0 0
      %1484 = vmatpush1.bf16.msra.mxu0 %v1443
      %1485 = vmatprep.subr.bf16.mxu0 0
      %1486 = vmatpush1.bf16.msra.mxu0 %v1442
      %1487 = vmatprep.subr.bf16.mxu0 0
      %1488 = vmatpush1.bf16.msra.mxu0 %v1441
      %1489 = vmatprep.subr.bf16.mxu0 0
      %1490 = vmatpush2.bf16.msra.mxu0 %v1456
      %1491 = vmatprep.subr.bf16.mxu0 0
      %1492 = vmatpush2.bf16.msra.mxu0 %v1455
      %1493 = vmatprep.subr.bf16.mxu0 0
      %1494 = vmatpush2.bf16.msra.mxu0 %v1454
      %1495 = vmatprep.subr.bf16.mxu0 0
      %1496 = vmatpush2.bf16.msra.mxu0 %v1453
      %1497 = vmatprep.subr.bf16.mxu0 0
      %1498 = vmatpush2.bf16.msra.mxu0 %v1452
      %1499 = vmatprep.subr.bf16.mxu0 0
      %1500 = vmatpush2.bf16.msra.mxu0 %v1451
      %1501 = vmatprep.subr.bf16.mxu0 0
      %1502 = vmatpush2.bf16.msra.mxu0 %v1450
      %1503 = vmatprep.subr.bf16.mxu0 0
      %1504 = vmatpush2.bf16.msra.mxu0 %v1449
      %1505 = vmatprep.mubr.bf16.mxu0 %v1338
      %1506 = vmatmul.mubr.bf16.gmra.mxu0 %v1337
      %v1507 = vpop.f32.mrf.mxu0
      %v1508 = vadd.f32 0.0, %v1507
      %v1509 = vpop.f32.mrf.mxu0
      %v1510 = vpop.f32.mrf.mxu0
      %v1511 = vadd.f32 0.0, %v1510
      %v1512 = vpop.f32.mrf.mxu0
      %1513 = vmatprep.mubr.bf16.mxu0 %v1340
      %1514 = vmatmul.mubr.bf16.gmra.mxu0 %v1339
      %v1515 = vpop.f32.mrf.mxu0
      %v1516 = vadd.f32 0.0, %v1515
      %v1517 = vpop.f32.mrf.mxu0
      %v1518 = vpop.f32.mrf.mxu0
      %v1519 = vadd.f32 0.0, %v1518
      %v1520 = vpop.f32.mrf.mxu0
      %1521 = vmatprep.mubr.bf16.mxu0 %v1342
      %1522 = vmatmul.mubr.bf16.gmra.mxu0 %v1341
      %v1523 = vpop.f32.mrf.mxu0
      %v1524 = vadd.f32 0.0, %v1523
      %v1525 = vpop.f32.mrf.mxu0
      %v1526 = vpop.f32.mrf.mxu0
      %v1527 = vadd.f32 0.0, %v1526
      %v1528 = vpop.f32.mrf.mxu0
      %1529 = vmatprep.mubr.bf16.mxu0 %v1344
      %1530 = vmatmul.mubr.bf16.gmra.mxu0 %v1343
      %v1531 = vpop.f32.mrf.mxu0
      %v1532 = vadd.f32 0.0, %v1531
      %v1533 = vpop.f32.mrf.mxu0
      %v1534 = vpop.f32.mrf.mxu0
      %v1535 = vadd.f32 0.0, %v1534
      %v1536 = vpop.f32.mrf.mxu0
      %1537 = vmatprep.mubr.bf16.mxu0 %v1346
      %1538 = vmatmul.mubr.bf16.gmra.mxu0 %v1345
      %v1539 = vpop.f32.mrf.mxu0
      %v1540 = vadd.f32 0.0, %v1539
      %v1541 = vpop.f32.mrf.mxu0
      %v1542 = vpop.f32.mrf.mxu0
      %v1543 = vadd.f32 0.0, %v1542
      %v1544 = vpop.f32.mrf.mxu0
      %1545 = vmatprep.mubr.bf16.mxu0 %v1348
      %1546 = vmatmul.mubr.bf16.gmra.mxu0 %v1347
      %v1547 = vpop.f32.mrf.mxu0
      %v1548 = vadd.f32 0.0, %v1547
      %v1549 = vpop.f32.mrf.mxu0
      %v1550 = vpop.f32.mrf.mxu0
      %v1551 = vadd.f32 0.0, %v1550
      %v1552 = vpop.f32.mrf.mxu0
      %1553 = vmatprep.mubr.bf16.mxu0 %v1350
      %1554 = vmatmul.mubr.bf16.gmra.mxu0 %v1349
      %v1555 = vpop.f32.mrf.mxu0
      %v1556 = vadd.f32 0.0, %v1555
      %v1557 = vpop.f32.mrf.mxu0
      %v1558 = vpop.f32.mrf.mxu0
      %v1559 = vadd.f32 0.0, %v1558
      %v1560 = vpop.f32.mrf.mxu0
      %1561 = vmatprep.mubr.bf16.mxu0 %v1352
      %1562 = vmatmul.mubr.bf16.gmra.mxu0 %v1351
      %v1563 = vpop.f32.mrf.mxu0
      %v1564 = vadd.f32 0.0, %v1563
      %v1565 = vpop.f32.mrf.mxu0
      %v1566 = vpop.f32.mrf.mxu0
      %v1567 = vadd.f32 0.0, %v1566
      %v1568 = vpop.f32.mrf.mxu0
      %1569 = vmatprep.mubr.bf16.mxu0 %v1354
      %1570 = vmatmul.mubr.bf16.gmra.mxu0 %v1353
      %v1571 = vpop.f32.mrf.mxu0
      %v1572 = vadd.f32 0.0, %v1571
      %v1573 = vpop.f32.mrf.mxu0
      %v1574 = vpop.f32.mrf.mxu0
      %v1575 = vadd.f32 0.0, %v1574
      %v1576 = vpop.f32.mrf.mxu0
      %1577 = vmatprep.mubr.bf16.mxu0 %v1356
      %1578 = vmatmul.mubr.bf16.gmra.mxu0 %v1355
      %v1579 = vpop.f32.mrf.mxu0
      %v1580 = vadd.f32 0.0, %v1579
      %v1581 = vpop.f32.mrf.mxu0
      %v1582 = vpop.f32.mrf.mxu0
      %v1583 = vpop.f32.mrf.mxu0
      %1584 = vdwg.mxu0
      %v1593 = vunpack.c.l.b16 %v1221
      %v1594 = vunpack.c.l.b16 %v1222
      %v1595 = vunpack.c.l.b16 %v1223
      %v1596 = vunpack.c.l.b16 %v1224
      %v1597 = vunpack.c.l.b16 %v1225
      %v1598 = vunpack.c.l.b16 %v1226
      %v1599 = vunpack.c.l.b16 %v1227
      %v1600 = vunpack.c.l.b16 %v1228
      %v1601 = vpack.c.b16 %v1594, %v1593
      %v1602 = vpack.c.b16 %v1596, %v1595
      %v1603 = vpack.c.b16 %v1598, %v1597
      %v1604 = vpack.c.b16 %v1600, %v1599
      %v1610 = vsel %vm820, %v1211, 0
      %v1613 = vsel %vm820, %v1212, 0
      %v1616 = vsel %vm820, %v1213, 0
      %v1619 = vsel %vm820, %v1214, 0
      %v1622 = vsel %vm820, %v1215, 0
      %v1625 = vsel %vm820, %v1216, 0
      %v1628 = vsel %vm820, %v1217, 0
      %v1631 = vsel %vm820, %v1218, 0
      %v1634 = vsel %vm820, %v1219, 0
      %v1637 = vsel %vm820, %v1220, 0
      %1639 = vmatprep.subr.bf16.mxu0 0
      %1640 = vmatpush1.bf16.msra.mxu0 0
      %1641 = vmatprep.subr.bf16.mxu0 0
      %1642 = vmatpush1.bf16.msra.mxu0 0
      %1643 = vmatprep.subr.bf16.mxu0 0
      %1644 = vmatpush1.bf16.msra.mxu0 0
      %1645 = vmatprep.subr.bf16.mxu0 0
      %1646 = vmatpush1.bf16.msra.mxu0 0
      %1647 = vmatprep.subr.bf16.mxu0 0
      %1648 = vmatpush1.bf16.msra.mxu0 %v1604
      %1649 = vmatprep.subr.bf16.mxu0 0
      %1650 = vmatpush1.bf16.msra.mxu0 %v1603
      %1651 = vmatprep.subr.bf16.mxu0 0
      %1652 = vmatpush1.bf16.msra.mxu0 %v1602
      %1653 = vmatprep.subr.bf16.mxu0 0
      %1654 = vmatpush1.bf16.msra.mxu0 %v1601
      %1655 = vmatprep.subr.bf16.mxu0 0
      %1656 = vmatpush2.bf16.msra.mxu0 0
      %1657 = vmatprep.subr.bf16.mxu0 0
      %1658 = vmatpush2.bf16.msra.mxu0 0
      %1659 = vmatprep.subr.bf16.mxu0 0
      %1660 = vmatpush2.bf16.msra.mxu0 0
      %1661 = vmatprep.subr.bf16.mxu0 0
      %1662 = vmatpush2.bf16.msra.mxu0 0
      %1663 = vmatprep.subr.bf16.mxu0 0
      %1664 = vmatpush2.bf16.msra.mxu0 0
      %1665 = vmatprep.subr.bf16.mxu0 0
      %1666 = vmatpush2.bf16.msra.mxu0 0
      %1667 = vmatprep.subr.bf16.mxu0 0
      %1668 = vmatpush2.bf16.msra.mxu0 0
      %1669 = vmatprep.subr.bf16.mxu0 0
      %1670 = vmatpush2.bf16.msra.mxu0 0
      %1671 = vmatprep.mubr.bf16.mxu0 0
      %1672 = vmatmul.mubr.bf16.gmra.mxu0 %v1610
      %v1673 = vpop.f32.mrf.mxu0
      %v1674 = vadd.f32 %v1508, %v1673
      %v1675 = vpop.f32.mrf.mxu0
      %v1676 = vpop.f32.mrf.mxu0
      %v1677 = vadd.f32 %v1511, %v1676
      %v1678 = vpop.f32.mrf.mxu0
      %1679 = vmatprep.mubr.bf16.mxu0 0
      %1680 = vmatmul.mubr.bf16.gmra.mxu0 %v1613
      %v1681 = vpop.f32.mrf.mxu0
      %v1682 = vadd.f32 %v1516, %v1681
      %v1683 = vpop.f32.mrf.mxu0
      %v1684 = vpop.f32.mrf.mxu0
      %v1685 = vadd.f32 %v1519, %v1684
      %v1686 = vpop.f32.mrf.mxu0
      %1687 = vmatprep.mubr.bf16.mxu0 0
      %1688 = vmatmul.mubr.bf16.gmra.mxu0 %v1616
      %v1689 = vpop.f32.mrf.mxu0
      %v1690 = vadd.f32 %v1524, %v1689
      %v1691 = vpop.f32.mrf.mxu0
      %v1692 = vpop.f32.mrf.mxu0
      %v1693 = vadd.f32 %v1527, %v1692
      %v1694 = vpop.f32.mrf.mxu0
      %1695 = vmatprep.mubr.bf16.mxu0 0
      %1696 = vmatmul.mubr.bf16.gmra.mxu0 %v1619
      %v1697 = vpop.f32.mrf.mxu0
      %v1698 = vadd.f32 %v1532, %v1697
      %v1699 = vpop.f32.mrf.mxu0
      %v1700 = vpop.f32.mrf.mxu0
      %v1701 = vadd.f32 %v1535, %v1700
      %v1702 = vpop.f32.mrf.mxu0
      %1703 = vmatprep.mubr.bf16.mxu0 0
      %1704 = vmatmul.mubr.bf16.gmra.mxu0 %v1622
      %v1705 = vpop.f32.mrf.mxu0
      %v1706 = vadd.f32 %v1540, %v1705
      %v1707 = vpop.f32.mrf.mxu0
      %v1708 = vpop.f32.mrf.mxu0
      %v1709 = vadd.f32 %v1543, %v1708
      %v1710 = vpop.f32.mrf.mxu0
      %1711 = vmatprep.mubr.bf16.mxu0 0
      %1712 = vmatmul.mubr.bf16.gmra.mxu0 %v1625
      %v1713 = vpop.f32.mrf.mxu0
      %v1714 = vadd.f32 %v1548, %v1713
      %v1715 = vpop.f32.mrf.mxu0
      %v1716 = vpop.f32.mrf.mxu0
      %v1717 = vadd.f32 %v1551, %v1716
      %v1718 = vpop.f32.mrf.mxu0
      %1719 = vmatprep.mubr.bf16.mxu0 0
      %1720 = vmatmul.mubr.bf16.gmra.mxu0 %v1628
      %v1721 = vpop.f32.mrf.mxu0
      %v1722 = vadd.f32 %v1556, %v1721
      %v1723 = vpop.f32.mrf.mxu0
      %v1724 = vpop.f32.mrf.mxu0
      %v1725 = vadd.f32 %v1559, %v1724
      %v1726 = vpop.f32.mrf.mxu0
      %1727 = vmatprep.mubr.bf16.mxu0 0
      %1728 = vmatmul.mubr.bf16.gmra.mxu0 %v1631
      %v1729 = vpop.f32.mrf.mxu0
      %v1730 = vadd.f32 %v1564, %v1729
      %v1731 = vpop.f32.mrf.mxu0
      %v1732 = vpop.f32.mrf.mxu0
      %v1733 = vadd.f32 %v1567, %v1732
      %v1734 = vpop.f32.mrf.mxu0
      %1735 = vmatprep.mubr.bf16.mxu0 0
      %1736 = vmatmul.mubr.bf16.gmra.mxu0 %v1634
      %v1737 = vpop.f32.mrf.mxu0
      %v1738 = vadd.f32 %v1572, %v1737
      %v1739 = vpop.f32.mrf.mxu0
      %v1740 = vpop.f32.mrf.mxu0
      %v1741 = vadd.f32 %v1575, %v1740
      %v1742 = vpop.f32.mrf.mxu0
      %1743 = vmatprep.mubr.bf16.mxu0 0
      %1744 = vmatmul.mubr.bf16.gmra.mxu0 %v1637
      %v1745 = vpop.f32.mrf.mxu0
      %v1746 = vadd.f32 %v1580, %v1745
      %v1747 = vpop.f32.mrf.mxu0
      %v1748 = vpop.f32.mrf.mxu0
      %v1749 = vpop.f32.mrf.mxu0
      %1750 = vdwg.mxu0
      %v1751 = vld [vmem:[%s10] sm:$0x1]
      %v1753 = vlaneseq
      %v1754 = vshrl.u32 %v1753, 7
      %v1755 = vsub.s32 0, %v1754
      %v1756 = vrot.slane %v1751, %v1755
      %v1758 = vadd.f32 %v1674, %v1756
      %v1759 = vadd.f32 %v1677, %v1756
      %v1760 = vadd.f32 %v1682, %v1756
      %v1761 = vadd.f32 %v1685, %v1756
      %v1762 = vadd.f32 %v1690, %v1756
      %v1763 = vadd.f32 %v1693, %v1756
      %v1764 = vadd.f32 %v1698, %v1756
      %v1765 = vadd.f32 %v1701, %v1756
      %v1766 = vadd.f32 %v1706, %v1756
      %v1767 = vadd.f32 %v1709, %v1756
      %v1768 = vadd.f32 %v1714, %v1756
      %v1769 = vadd.f32 %v1717, %v1756
      %v1770 = vadd.f32 %v1722, %v1756
      %v1771 = vadd.f32 %v1725, %v1756
      %v1772 = vadd.f32 %v1730, %v1756
      %v1773 = vadd.f32 %v1733, %v1756
      %v1774 = vadd.f32 %v1738, %v1756
      %v1775 = vadd.f32 %v1741, %v1756
      %v1776 = vadd.f32 %v1746, %v1756
      %v1777 = vmax.f32 %v1758, 0.0
      %v1778 = vmax.f32 %v1759, 0.0
      %v1779 = vmax.f32 %v1760, 0.0
      %v1780 = vmax.f32 %v1761, 0.0
      %v1781 = vmax.f32 %v1762, 0.0
      %v1782 = vmax.f32 %v1763, 0.0
      %v1783 = vmax.f32 %v1764, 0.0
      %v1784 = vmax.f32 %v1765, 0.0
      %v1785 = vmax.f32 %v1766, 0.0
      %v1786 = vmax.f32 %v1767, 0.0
      %v1787 = vmax.f32 %v1768, 0.0
      %v1788 = vmax.f32 %v1769, 0.0
      %v1789 = vmax.f32 %v1770, 0.0
      %v1790 = vmax.f32 %v1771, 0.0
      %v1791 = vmax.f32 %v1772, 0.0
      %v1792 = vmax.f32 %v1773, 0.0
      %v1793 = vmax.f32 %v1774, 0.0
      %v1794 = vmax.f32 %v1775, 0.0
      %v1795 = vmax.f32 %v1776, 0.0
      %v1796 = vpack.c.bf16 %v1778, %v1777
      %v1797 = vpack.c.bf16 %v1780, %v1779
      %v1798 = vpack.c.bf16 %v1782, %v1781
      %v1799 = vpack.c.bf16 %v1784, %v1783
      %v1800 = vpack.c.bf16 %v1786, %v1785
      %v1801 = vpack.c.bf16 %v1788, %v1787
      %v1802 = vpack.c.bf16 %v1790, %v1789
      %v1803 = vpack.c.bf16 %v1792, %v1791
      %v1804 = vpack.c.bf16 %v1794, %v1793
      %v1805 = vpack.c.bf16 %v1795, %v1795
      %v1806 = vld [vmem:[%s11] sm:$0xf]
      %v1807 = vld [vmem:[%s11 + $0x4] sm:$0xf]
      %v1808 = vld [vmem:[%s11 + $0x8] sm:$0xf]
      %v1809 = vld [vmem:[%s11 + $0xc] sm:$0xf]
      %v1810 = vld [vmem:[%s683] sm:$0xf]
      %v1811 = vld [vmem:[%s683 + $0x4] sm:$0xf]
      %v1812 = vld [vmem:[%s683 + $0x8] sm:$0xf]
      %v1813 = vld [vmem:[%s683 + $0xc] sm:$0xf]
      %v1814 = vld [vmem:[%s683 + $0x10] sm:$0xf]
      %v1815 = vld [vmem:[%s683 + $0x14] sm:$0xf]
      %v1816 = vld [vmem:[%s683 + $0x18] sm:$0xf]
      %v1817 = vld [vmem:[%s683 + $0x1c] sm:$0xf]
      %v1818 = vld [vmem:[%s683 + $0x20] sm:$0xf]
      %v1819 = vld [vmem:[%s683 + $0x24] sm:$0xf]
      %v1820 = vld [vmem:[%s683 + $0x28] sm:$0xf]
      %v1821 = vld [vmem:[%s683 + $0x2c] sm:$0xf]
      %v1822 = vld [vmem:[%s683 + $0x30] sm:$0xf]
      %v1823 = vld [vmem:[%s683 + $0x34] sm:$0xf]
      %v1824 = vld [vmem:[%s683 + $0x38] sm:$0xf]
      %v1825 = vld [vmem:[%s683 + $0x3c] sm:$0xf]
      %v1826 = vld [vmem:[%s683 + $0x40] sm:$0xf]
      %v1827 = vld [vmem:[%s683 + $0x44] sm:$0xf]
      %v1828 = vld [vmem:[%s683 + $0x48] sm:$0xf]
      %v1829 = vld [vmem:[%s12] sm:$0xf]
      %v1830 = vld [vmem:[%s12 + $0x4] sm:$0xf]
      %v1831 = vld [vmem:[%s12 + $0x8] sm:$0xf]
      %v1832 = vld [vmem:[%s12 + $0xc] sm:$0xf]
      %v1833 = vld [vmem:[%s12 + $0x10] sm:$0xf]
      %v1834 = vld [vmem:[%s12 + $0x14] sm:$0xf]
      %v1835 = vld [vmem:[%s12 + $0x18] sm:$0xf]
      %v1836 = vld [vmem:[%s12 + $0x1c] sm:$0xf]
      %v1837 = vld [vmem:[%s12 + $0x20] sm:$0xf]
      %v1838 = vld [vmem:[%s12 + $0x24] sm:$0xf]
      %v1839 = vld [vmem:[%s12 + $0x28] sm:$0xf]
      %v1840 = vld [vmem:[%s12 + $0x2c] sm:$0xf]
      %v1841 = vld [vmem:[%s12 + $0x30] sm:$0xf]
      %v1842 = vld [vmem:[%s12 + $0x34] sm:$0xf]
      %v1843 = vld [vmem:[%s12 + $0x38] sm:$0xf]
      %v1844 = vld [vmem:[%s12 + $0x3c] sm:$0xf]
      %v1864 = vunpack.c.l.b16 %v1810
      %v1865 = vunpack.c.l.b16 %v1811
      %v1866 = vunpack.c.l.b16 %v1812
      %v1867 = vunpack.c.l.b16 %v1813
      %v1868 = vunpack.c.l.b16 %v1814
      %v1869 = vunpack.c.l.b16 %v1815
      %v1870 = vunpack.c.l.b16 %v1816
      %v1871 = vunpack.c.l.b16 %v1817
      %v1872 = vunpack.c.l.b16 %v1818
      %v1873 = vunpack.c.l.b16 %v1819
      %v1874 = vunpack.c.l.b16 %v1820
      %v1875 = vunpack.c.l.b16 %v1821
      %v1876 = vunpack.c.l.b16 %v1822
      %v1877 = vunpack.c.l.b16 %v1823
      %v1878 = vunpack.c.l.b16 %v1824
      %v1879 = vunpack.c.l.b16 %v1825
      %v1880 = vunpack.c.l.b16 %v1826
      %v1881 = vunpack.c.l.b16 %v1827
      %v1882 = vunpack.c.l.b16 %v1828
      %v1883 = vpack.c.b16 %v1865, %v1864
      %v1884 = vpack.c.b16 %v1867, %v1866
      %v1885 = vpack.c.b16 %v1869, %v1868
      %v1886 = vpack.c.b16 %v1871, %v1870
      %v1887 = vpack.c.b16 %v1873, %v1872
      %v1888 = vpack.c.b16 %v1875, %v1874
      %v1889 = vpack.c.b16 %v1877, %v1876
      %v1890 = vpack.c.b16 %v1879, %v1878
      %v1891 = vpack.c.b16 %v1881, %v1880
      %v1892 = vpack.c.b16 %v1882, %v1882
      %v1919 = vunpack.c.l.b16 %v1829
      %v1920 = vunpack.c.l.b16 %v1830
      %v1921 = vunpack.c.l.b16 %v1831
      %v1922 = vunpack.c.l.b16 %v1832
      %v1923 = vunpack.c.l.b16 %v1833
      %v1924 = vunpack.c.l.b16 %v1834
      %v1925 = vunpack.c.l.b16 %v1835
      %v1926 = vunpack.c.l.b16 %v1836
      %v1927 = vunpack.c.l.b16 %v1837
      %v1928 = vunpack.c.l.b16 %v1838
      %v1929 = vunpack.c.l.b16 %v1839
      %v1930 = vunpack.c.l.b16 %v1840
      %v1931 = vunpack.c.l.b16 %v1841
      %v1932 = vunpack.c.l.b16 %v1842
      %v1933 = vunpack.c.l.b16 %v1843
      %v1934 = vunpack.c.l.b16 %v1844
      %v1935 = vpack.c.b16 %v1920, %v1919
      %v1936 = vpack.c.b16 %v1922, %v1921
      %v1937 = vpack.c.b16 %v1924, %v1923
      %v1938 = vpack.c.b16 %v1926, %v1925
      %v1939 = vpack.c.b16 %v1928, %v1927
      %v1940 = vpack.c.b16 %v1930, %v1929
      %v1941 = vpack.c.b16 %v1932, %v1931
      %v1942 = vpack.c.b16 %v1934, %v1933
      %1951 = vmatprep.subr.bf16.mxu0 0
      %1952 = vmatpush1.bf16.msra.mxu0 %v1942
      %1953 = vmatprep.subr.bf16.mxu0 0
      %1954 = vmatpush1.bf16.msra.mxu0 %v1941
      %1955 = vmatprep.subr.bf16.mxu0 0
      %1956 = vmatpush1.bf16.msra.mxu0 %v1940
      %1957 = vmatprep.subr.bf16.mxu0 0
      %1958 = vmatpush1.bf16.msra.mxu0 %v1939
      %1959 = vmatprep.subr.bf16.mxu0 0
      %1960 = vmatpush1.bf16.msra.mxu0 %v1938
      %1961 = vmatprep.subr.bf16.mxu0 0
      %1962 = vmatpush1.bf16.msra.mxu0 %v1937
      %1963 = vmatprep.subr.bf16.mxu0 0
      %1964 = vmatpush1.bf16.msra.mxu0 %v1936
      %1965 = vmatprep.subr.bf16.mxu0 0
      %1966 = vmatpush1.bf16.msra.mxu0 %v1935
      %1967 = vmatprep.subr.bf16.mxu0 0
      %1968 = vmatpush2.bf16.msra.mxu0 0
      %1969 = vmatprep.subr.bf16.mxu0 0
      %1970 = vmatpush2.bf16.msra.mxu0 0
      %1971 = vmatprep.subr.bf16.mxu0 0
      %1972 = vmatpush2.bf16.msra.mxu0 0
      %1973 = vmatprep.subr.bf16.mxu0 0
      %1974 = vmatpush2.bf16.msra.mxu0 0
      %1975 = vmatprep.subr.bf16.mxu0 0
      %1976 = vmatpush2.bf16.msra.mxu0 0
      %1977 = vmatprep.subr.bf16.mxu0 0
      %1978 = vmatpush2.bf16.msra.mxu0 0
      %1979 = vmatprep.subr.bf16.mxu0 0
      %1980 = vmatpush2.bf16.msra.mxu0 0
      %1981 = vmatprep.subr.bf16.mxu0 0
      %1982 = vmatpush2.bf16.msra.mxu0 0
      %1983 = vmatprep.mubr.bf16.mxu0 0
      %1984 = vmatmul.mubr.bf16.gmra.mxu0 %v1883
      %v1985 = vpop.f32.mrf.mxu0
      %v1986 = vadd.f32 0.0, %v1985
      %v1987 = vpop.f32.mrf.mxu0
      %v1988 = vpop.f32.mrf.mxu0
      %v1989 = vadd.f32 0.0, %v1988
      %v1990 = vpop.f32.mrf.mxu0
      %1991 = vmatprep.mubr.bf16.mxu0 0
      %1992 = vmatmul.mubr.bf16.gmra.mxu0 %v1884
      %v1993 = vpop.f32.mrf.mxu0
      %v1994 = vadd.f32 0.0, %v1993
      %v1995 = vpop.f32.mrf.mxu0
      %v1996 = vpop.f32.mrf.mxu0
      %v1997 = vadd.f32 0.0, %v1996
      %v1998 = vpop.f32.mrf.mxu0
      %1999 = vmatprep.mubr.bf16.mxu0 0
      %2000 = vmatmul.mubr.bf16.gmra.mxu0 %v1885
      %v2001 = vpop.f32.mrf.mxu0
      %v2002 = vadd.f32 0.0, %v2001
      %v2003 = vpop.f32.mrf.mxu0
      %v2004 = vpop.f32.mrf.mxu0
      %v2005 = vadd.f32 0.0, %v2004
      %v2006 = vpop.f32.mrf.mxu0
      %2007 = vmatprep.mubr.bf16.mxu0 0
      %2008 = vmatmul.mubr.bf16.gmra.mxu0 %v1886
      %v2009 = vpop.f32.mrf.mxu0
      %v2010 = vadd.f32 0.0, %v2009
      %v2011 = vpop.f32.mrf.mxu0
      %v2012 = vpop.f32.mrf.mxu0
      %v2013 = vadd.f32 0.0, %v2012
      %v2014 = vpop.f32.mrf.mxu0
      %2015 = vmatprep.mubr.bf16.mxu0 0
      %2016 = vmatmul.mubr.bf16.gmra.mxu0 %v1887
      %v2017 = vpop.f32.mrf.mxu0
      %v2018 = vadd.f32 0.0, %v2017
      %v2019 = vpop.f32.mrf.mxu0
      %v2020 = vpop.f32.mrf.mxu0
      %v2021 = vadd.f32 0.0, %v2020
      %v2022 = vpop.f32.mrf.mxu0
      %2023 = vmatprep.mubr.bf16.mxu0 0
      %2024 = vmatmul.mubr.bf16.gmra.mxu0 %v1888
      %v2025 = vpop.f32.mrf.mxu0
      %v2026 = vadd.f32 0.0, %v2025
      %v2027 = vpop.f32.mrf.mxu0
      %v2028 = vpop.f32.mrf.mxu0
      %v2029 = vadd.f32 0.0, %v2028
      %v2030 = vpop.f32.mrf.mxu0
      %2031 = vmatprep.mubr.bf16.mxu0 0
      %2032 = vmatmul.mubr.bf16.gmra.mxu0 %v1889
      %v2033 = vpop.f32.mrf.mxu0
      %v2034 = vadd.f32 0.0, %v2033
      %v2035 = vpop.f32.mrf.mxu0
      %v2036 = vpop.f32.mrf.mxu0
      %v2037 = vadd.f32 0.0, %v2036
      %v2038 = vpop.f32.mrf.mxu0
      %2039 = vmatprep.mubr.bf16.mxu0 0
      %2040 = vmatmul.mubr.bf16.gmra.mxu0 %v1890
      %v2041 = vpop.f32.mrf.mxu0
      %v2042 = vadd.f32 0.0, %v2041
      %v2043 = vpop.f32.mrf.mxu0
      %v2044 = vpop.f32.mrf.mxu0
      %v2045 = vadd.f32 0.0, %v2044
      %v2046 = vpop.f32.mrf.mxu0
      %2047 = vmatprep.mubr.bf16.mxu0 0
      %2048 = vmatmul.mubr.bf16.gmra.mxu0 %v1891
      %v2049 = vpop.f32.mrf.mxu0
      %v2050 = vadd.f32 0.0, %v2049
      %v2051 = vpop.f32.mrf.mxu0
      %v2052 = vpop.f32.mrf.mxu0
      %v2053 = vadd.f32 0.0, %v2052
      %v2054 = vpop.f32.mrf.mxu0
      %2055 = vmatprep.mubr.bf16.mxu0 0
      %2056 = vmatmul.mubr.bf16.gmra.mxu0 %v1892
      %v2057 = vpop.f32.mrf.mxu0
      %v2058 = vadd.f32 0.0, %v2057
      %v2059 = vpop.f32.mrf.mxu0
      %v2060 = vpop.f32.mrf.mxu0
      %v2061 = vpop.f32.mrf.mxu0
      %2062 = vdwg.mxu0
      %v2067 = vunpack.c.l.b16 %v1806
      %v2068 = vunpack.c.l.b16 %v1807
      %v2069 = vunpack.c.l.b16 %v1808
      %v2070 = vunpack.c.l.b16 %v1809
      %v2071 = vpack.c.b16 %v2068, %v2067
      %v2072 = vpack.c.b16 %v2070, %v2069
      %v2076 = vsel %vm1023, %v1796, 0
      %v2079 = vsel %vm1023, %v1797, 0
      %v2082 = vsel %vm1023, %v1798, 0
      %v2085 = vsel %vm1023, %v1799, 0
      %v2088 = vsel %vm1023, %v1800, 0
      %v2091 = vsel %vm1023, %v1801, 0
      %v2094 = vsel %vm1023, %v1802, 0
      %v2097 = vsel %vm1023, %v1803, 0
      %v2100 = vsel %vm1023, %v1804, 0
      %v2103 = vsel %vm1023, %v1805, 0
      %2105 = vmatprep.subr.bf16.mxu0 0
      %2106 = vmatpush1.bf16.msra.mxu0 0
      %2107 = vmatprep.subr.bf16.mxu0 0
      %2108 = vmatpush1.bf16.msra.mxu0 0
      %2109 = vmatprep.subr.bf16.mxu0 0
      %2110 = vmatpush1.bf16.msra.mxu0 0
      %2111 = vmatprep.subr.bf16.mxu0 0
      %2112 = vmatpush1.bf16.msra.mxu0 0
      %2113 = vmatprep.subr.bf16.mxu0 0
      %2114 = vmatpush1.bf16.msra.mxu0 0
      %2115 = vmatprep.subr.bf16.mxu0 0
      %2116 = vmatpush1.bf16.msra.mxu0 0
      %2117 = vmatprep.subr.bf16.mxu0 0
      %2118 = vmatpush1.bf16.msra.mxu0 %v2072
      %2119 = vmatprep.subr.bf16.mxu0 0
      %2120 = vmatpush1.bf16.msra.mxu0 %v2071
      %2121 = vmatprep.subr.bf16.mxu0 0
      %2122 = vmatpush2.bf16.msra.mxu0 0
      %2123 = vmatprep.subr.bf16.mxu0 0
      %2124 = vmatpush2.bf16.msra.mxu0 0
      %2125 = vmatprep.subr.bf16.mxu0 0
      %2126 = vmatpush2.bf16.msra.mxu0 0
      %2127 = vmatprep.subr.bf16.mxu0 0
      %2128 = vmatpush2.bf16.msra.mxu0 0
      %2129 = vmatprep.subr.bf16.mxu0 0
      %2130 = vmatpush2.bf16.msra.mxu0 0
      %2131 = vmatprep.subr.bf16.mxu0 0
      %2132 = vmatpush2.bf16.msra.mxu0 0
      %2133 = vmatprep.subr.bf16.mxu0 0
      %2134 = vmatpush2.bf16.msra.mxu0 0
      %2135 = vmatprep.subr.bf16.mxu0 0
      %2136 = vmatpush2.bf16.msra.mxu0 0
      %2137 = vmatprep.mubr.bf16.mxu0 0
      %2138 = vmatmul.mubr.bf16.gmra.mxu0 %v2076
      %v2139 = vpop.f32.mrf.mxu0
      %v2140 = vadd.f32 %v1986, %v2139
      %v2141 = vpop.f32.mrf.mxu0
      %v2142 = vpop.f32.mrf.mxu0
      %v2143 = vadd.f32 %v1989, %v2142
      %v2144 = vpop.f32.mrf.mxu0
      %2145 = vmatprep.mubr.bf16.mxu0 0
      %2146 = vmatmul.mubr.bf16.gmra.mxu0 %v2079
      %v2147 = vpop.f32.mrf.mxu0
      %v2148 = vadd.f32 %v1994, %v2147
      %v2149 = vpop.f32.mrf.mxu0
      %v2150 = vpop.f32.mrf.mxu0
      %v2151 = vadd.f32 %v1997, %v2150
      %v2152 = vpop.f32.mrf.mxu0
      %2153 = vmatprep.mubr.bf16.mxu0 0
      %2154 = vmatmul.mubr.bf16.gmra.mxu0 %v2082
      %v2155 = vpop.f32.mrf.mxu0
      %v2156 = vadd.f32 %v2002, %v2155
      %v2157 = vpop.f32.mrf.mxu0
      %v2158 = vpop.f32.mrf.mxu0
      %v2159 = vadd.f32 %v2005, %v2158
      %v2160 = vpop.f32.mrf.mxu0
      %2161 = vmatprep.mubr.bf16.mxu0 0
      %2162 = vmatmul.mubr.bf16.gmra.mxu0 %v2085
      %v2163 = vpop.f32.mrf.mxu0
      %v2164 = vadd.f32 %v2010, %v2163
      %v2165 = vpop.f32.mrf.mxu0
      %v2166 = vpop.f32.mrf.mxu0
      %v2167 = vadd.f32 %v2013, %v2166
      %v2168 = vpop.f32.mrf.mxu0
      %2169 = vmatprep.mubr.bf16.mxu0 0
      %2170 = vmatmul.mubr.bf16.gmra.mxu0 %v2088
      %v2171 = vpop.f32.mrf.mxu0
      %v2172 = vadd.f32 %v2018, %v2171
      %v2173 = vpop.f32.mrf.mxu0
      %v2174 = vpop.f32.mrf.mxu0
      %v2175 = vadd.f32 %v2021, %v2174
      %v2176 = vpop.f32.mrf.mxu0
      %2177 = vmatprep.mubr.bf16.mxu0 0
      %2178 = vmatmul.mubr.bf16.gmra.mxu0 %v2091
      %v2179 = vpop.f32.mrf.mxu0
      %v2180 = vadd.f32 %v2026, %v2179
      %v2181 = vpop.f32.mrf.mxu0
      %v2182 = vpop.f32.mrf.mxu0
      %v2183 = vadd.f32 %v2029, %v2182
      %v2184 = vpop.f32.mrf.mxu0
      %2185 = vmatprep.mubr.bf16.mxu0 0
      %2186 = vmatmul.mubr.bf16.gmra.mxu0 %v2094
      %v2187 = vpop.f32.mrf.mxu0
      %v2188 = vadd.f32 %v2034, %v2187
      %v2189 = vpop.f32.mrf.mxu0
      %v2190 = vpop.f32.mrf.mxu0
      %v2191 = vadd.f32 %v2037, %v2190
      %v2192 = vpop.f32.mrf.mxu0
      %2193 = vmatprep.mubr.bf16.mxu0 0
      %2194 = vmatmul.mubr.bf16.gmra.mxu0 %v2097
      %v2195 = vpop.f32.mrf.mxu0
      %v2196 = vadd.f32 %v2042, %v2195
      %v2197 = vpop.f32.mrf.mxu0
      %v2198 = vpop.f32.mrf.mxu0
      %v2199 = vadd.f32 %v2045, %v2198
      %v2200 = vpop.f32.mrf.mxu0
      %2201 = vmatprep.mubr.bf16.mxu0 0
      %2202 = vmatmul.mubr.bf16.gmra.mxu0 %v2100
      %v2203 = vpop.f32.mrf.mxu0
      %v2204 = vadd.f32 %v2050, %v2203
      %v2205 = vpop.f32.mrf.mxu0
      %v2206 = vpop.f32.mrf.mxu0
      %v2207 = vadd.f32 %v2053, %v2206
      %v2208 = vpop.f32.mrf.mxu0
      %2209 = vmatprep.mubr.bf16.mxu0 0
      %2210 = vmatmul.mubr.bf16.gmra.mxu0 %v2103
      %v2211 = vpop.f32.mrf.mxu0
      %v2212 = vadd.f32 %v2058, %v2211
      %v2213 = vpop.f32.mrf.mxu0
      %v2214 = vpop.f32.mrf.mxu0
      %v2215 = vpop.f32.mrf.mxu0
      %2216 = vdwg.mxu0
      %v2217 = vld [vmem:[%s13] sm:$0x1]
      %v2219 = vlaneseq
      %v2220 = vshrl.u32 %v2219, 7
      %v2221 = vsub.s32 0, %v2220
      %v2222 = vrot.slane %v2217, %v2221
      %v2224 = vadd.f32 %v2140, %v2222
      %v2225 = vadd.f32 %v2143, %v2222
      %v2226 = vadd.f32 %v2148, %v2222
      %v2227 = vadd.f32 %v2151, %v2222
      %v2228 = vadd.f32 %v2156, %v2222
      %v2229 = vadd.f32 %v2159, %v2222
      %v2230 = vadd.f32 %v2164, %v2222
      %v2231 = vadd.f32 %v2167, %v2222
      %v2232 = vadd.f32 %v2172, %v2222
      %v2233 = vadd.f32 %v2175, %v2222
      %v2234 = vadd.f32 %v2180, %v2222
      %v2235 = vadd.f32 %v2183, %v2222
      %v2236 = vadd.f32 %v2188, %v2222
      %v2237 = vadd.f32 %v2191, %v2222
      %v2238 = vadd.f32 %v2196, %v2222
      %v2239 = vadd.f32 %v2199, %v2222
      %v2240 = vadd.f32 %v2204, %v2222
      %v2241 = vadd.f32 %v2207, %v2222
      %v2242 = vadd.f32 %v2212, %v2222
      %v2243 = vmax.f32 %v2224, 0.0
      %v2244 = vmax.f32 %v2225, 0.0
      %v2245 = vmax.f32 %v2226, 0.0
      %v2246 = vmax.f32 %v2227, 0.0
      %v2247 = vmax.f32 %v2228, 0.0
      %v2248 = vmax.f32 %v2229, 0.0
      %v2249 = vmax.f32 %v2230, 0.0
      %v2250 = vmax.f32 %v2231, 0.0
      %v2251 = vmax.f32 %v2232, 0.0
      %v2252 = vmax.f32 %v2233, 0.0
      %v2253 = vmax.f32 %v2234, 0.0
      %v2254 = vmax.f32 %v2235, 0.0
      %v2255 = vmax.f32 %v2236, 0.0
      %v2256 = vmax.f32 %v2237, 0.0
      %v2257 = vmax.f32 %v2238, 0.0
      %v2258 = vmax.f32 %v2239, 0.0
      %v2259 = vmax.f32 %v2240, 0.0
      %v2260 = vmax.f32 %v2241, 0.0
      %v2261 = vmax.f32 %v2242, 0.0
      %v2262 = vpack.c.bf16 %v2244, %v2243
      %v2263 = vpack.c.bf16 %v2246, %v2245
      %v2264 = vpack.c.bf16 %v2248, %v2247
      %v2265 = vpack.c.bf16 %v2250, %v2249
      %v2266 = vpack.c.bf16 %v2252, %v2251
      %v2267 = vpack.c.bf16 %v2254, %v2253
      %v2268 = vpack.c.bf16 %v2256, %v2255
      %v2269 = vpack.c.bf16 %v2258, %v2257
      %v2270 = vpack.c.bf16 %v2260, %v2259
      %v2271 = vpack.c.bf16 %v2261, %v2261
      %v2272 = vld [vmem:[%s14] sm:$0xf]
      %v2273 = vld [vmem:[%s14 + $0x4] sm:$0xf]
      %v2274 = vld [vmem:[%s689] sm:$0xf]
      %v2275 = vld [vmem:[%s689 + $0x4] sm:$0xf]
      %v2276 = vld [vmem:[%s689 + $0x8] sm:$0xf]
      %v2277 = vld [vmem:[%s689 + $0xc] sm:$0xf]
      %v2278 = vld [vmem:[%s689 + $0x10] sm:$0xf]
      %v2279 = vld [vmem:[%s689 + $0x14] sm:$0xf]
      %v2280 = vld [vmem:[%s689 + $0x18] sm:$0xf]
      %v2281 = vld [vmem:[%s689 + $0x1c] sm:$0xf]
      %v2282 = vld [vmem:[%s689 + $0x20] sm:$0xf]
      %v2283 = vld [vmem:[%s689 + $0x24] sm:$0xf]
      %v2284 = vld [vmem:[%s689 + $0x28] sm:$0xf]
      %v2285 = vld [vmem:[%s689 + $0x2c] sm:$0xf]
      %v2286 = vld [vmem:[%s689 + $0x30] sm:$0xf]
      %v2287 = vld [vmem:[%s689 + $0x34] sm:$0xf]
      %v2288 = vld [vmem:[%s689 + $0x38] sm:$0xf]
      %v2289 = vld [vmem:[%s689 + $0x3c] sm:$0xf]
      %v2290 = vld [vmem:[%s689 + $0x40] sm:$0xf]
      %v2291 = vld [vmem:[%s689 + $0x44] sm:$0xf]
      %v2292 = vld [vmem:[%s689 + $0x48] sm:$0xf]
      %v2293 = vld [vmem:[%s15] sm:$0xf]
      %v2294 = vld [vmem:[%s15 + $0x4] sm:$0xf]
      %v2295 = vld [vmem:[%s15 + $0x8] sm:$0xf]
      %v2296 = vld [vmem:[%s15 + $0xc] sm:$0xf]
      %v2297 = vld [vmem:[%s15 + $0x10] sm:$0xf]
      %v2298 = vld [vmem:[%s15 + $0x14] sm:$0xf]
      %v2299 = vld [vmem:[%s15 + $0x18] sm:$0xf]
      %v2300 = vld [vmem:[%s15 + $0x1c] sm:$0xf]
      %v2320 = vunpack.c.l.b16 %v2274
      %v2321 = vunpack.c.l.b16 %v2275
      %v2322 = vunpack.c.l.b16 %v2276
      %v2323 = vunpack.c.l.b16 %v2277
      %v2324 = vunpack.c.l.b16 %v2278
      %v2325 = vunpack.c.l.b16 %v2279
      %v2326 = vunpack.c.l.b16 %v2280
      %v2327 = vunpack.c.l.b16 %v2281
      %v2328 = vunpack.c.l.b16 %v2282
      %v2329 = vunpack.c.l.b16 %v2283
      %v2330 = vunpack.c.l.b16 %v2284
      %v2331 = vunpack.c.l.b16 %v2285
      %v2332 = vunpack.c.l.b16 %v2286
      %v2333 = vunpack.c.l.b16 %v2287
      %v2334 = vunpack.c.l.b16 %v2288
      %v2335 = vunpack.c.l.b16 %v2289
      %v2336 = vunpack.c.l.b16 %v2290
      %v2337 = vunpack.c.l.b16 %v2291
      %v2338 = vunpack.c.l.b16 %v2292
      %v2339 = vpack.c.b16 %v2321, %v2320
      %v2340 = vpack.c.b16 %v2323, %v2322
      %v2341 = vpack.c.b16 %v2325, %v2324
      %v2342 = vpack.c.b16 %v2327, %v2326
      %v2343 = vpack.c.b16 %v2329, %v2328
      %v2344 = vpack.c.b16 %v2331, %v2330
      %v2345 = vpack.c.b16 %v2333, %v2332
      %v2346 = vpack.c.b16 %v2335, %v2334
      %v2347 = vpack.c.b16 %v2337, %v2336
      %v2348 = vpack.c.b16 %v2338, %v2338
      %v2357 = vunpack.c.l.b16 %v2293
      %v2358 = vunpack.c.l.b16 %v2294
      %v2359 = vunpack.c.l.b16 %v2295
      %v2360 = vunpack.c.l.b16 %v2296
      %v2361 = vunpack.c.l.b16 %v2297
      %v2362 = vunpack.c.l.b16 %v2298
      %v2363 = vunpack.c.l.b16 %v2299
      %v2364 = vunpack.c.l.b16 %v2300
      %v2365 = vpack.c.b16 %v2358, %v2357
      %v2366 = vpack.c.b16 %v2360, %v2359
      %v2367 = vpack.c.b16 %v2362, %v2361
      %v2368 = vpack.c.b16 %v2364, %v2363
      %v2374 = vsel %vm820, %v2339, 0
      %v2377 = vsel %vm820, %v2340, 0
      %v2380 = vsel %vm820, %v2341, 0
      %v2383 = vsel %vm820, %v2342, 0
      %v2386 = vsel %vm820, %v2343, 0
      %v2389 = vsel %vm820, %v2344, 0
      %v2392 = vsel %vm820, %v2345, 0
      %v2395 = vsel %vm820, %v2346, 0
      %v2398 = vsel %vm820, %v2347, 0
      %v2401 = vsel %vm820, %v2348, 0
      %2403 = vmatprep.subr.bf16.mxu0 0
      %2404 = vmatpush1.bf16.msra.mxu0 0
      %2405 = vmatprep.subr.bf16.mxu0 0
      %2406 = vmatpush1.bf16.msra.mxu0 0
      %2407 = vmatprep.subr.bf16.mxu0 0
      %2408 = vmatpush1.bf16.msra.mxu0 0
      %2409 = vmatprep.subr.bf16.mxu0 0
      %2410 = vmatpush1.bf16.msra.mxu0 0
      %2411 = vmatprep.subr.bf16.mxu0 0
      %2412 = vmatpush1.bf16.msra.mxu0 %v2368
      %2413 = vmatprep.subr.bf16.mxu0 0
      %2414 = vmatpush1.bf16.msra.mxu0 %v2367
      %2415 = vmatprep.subr.bf16.mxu0 0
      %2416 = vmatpush1.bf16.msra.mxu0 %v2366
      %2417 = vmatprep.subr.bf16.mxu0 0
      %2418 = vmatpush1.bf16.msra.mxu0 %v2365
      %2419 = vmatprep.subr.bf16.mxu0 0
      %2420 = vmatpush2.bf16.msra.mxu0 0
      %2421 = vmatprep.subr.bf16.mxu0 0
      %2422 = vmatpush2.bf16.msra.mxu0 0
      %2423 = vmatprep.subr.bf16.mxu0 0
      %2424 = vmatpush2.bf16.msra.mxu0 0
      %2425 = vmatprep.subr.bf16.mxu0 0
      %2426 = vmatpush2.bf16.msra.mxu0 0
      %2427 = vmatprep.subr.bf16.mxu0 0
      %2428 = vmatpush2.bf16.msra.mxu0 0
      %2429 = vmatprep.subr.bf16.mxu0 0
      %2430 = vmatpush2.bf16.msra.mxu0 0
      %2431 = vmatprep.subr.bf16.mxu0 0
      %2432 = vmatpush2.bf16.msra.mxu0 0
      %2433 = vmatprep.subr.bf16.mxu0 0
      %2434 = vmatpush2.bf16.msra.mxu0 0
      %2435 = vmatprep.mubr.bf16.mxu0 0
      %2436 = vmatmul.mubr.bf16.gmra.mxu0 %v2374
      %v2437 = vpop.f32.mrf.mxu0
      %v2438 = vadd.f32 0.0, %v2437
      %v2439 = vpop.f32.mrf.mxu0
      %v2440 = vpop.f32.mrf.mxu0
      %v2441 = vadd.f32 0.0, %v2440
      %v2442 = vpop.f32.mrf.mxu0
      %2443 = vmatprep.mubr.bf16.mxu0 0
      %2444 = vmatmul.mubr.bf16.gmra.mxu0 %v2377
      %v2445 = vpop.f32.mrf.mxu0
      %v2446 = vadd.f32 0.0, %v2445
      %v2447 = vpop.f32.mrf.mxu0
      %v2448 = vpop.f32.mrf.mxu0
      %v2449 = vadd.f32 0.0, %v2448
      %v2450 = vpop.f32.mrf.mxu0
      %2451 = vmatprep.mubr.bf16.mxu0 0
      %2452 = vmatmul.mubr.bf16.gmra.mxu0 %v2380
      %v2453 = vpop.f32.mrf.mxu0
      %v2454 = vadd.f32 0.0, %v2453
      %v2455 = vpop.f32.mrf.mxu0
      %v2456 = vpop.f32.mrf.mxu0
      %v2457 = vadd.f32 0.0, %v2456
      %v2458 = vpop.f32.mrf.mxu0
      %2459 = vmatprep.mubr.bf16.mxu0 0
      %2460 = vmatmul.mubr.bf16.gmra.mxu0 %v2383
      %v2461 = vpop.f32.mrf.mxu0
      %v2462 = vadd.f32 0.0, %v2461
      %v2463 = vpop.f32.mrf.mxu0
      %v2464 = vpop.f32.mrf.mxu0
      %v2465 = vadd.f32 0.0, %v2464
      %v2466 = vpop.f32.mrf.mxu0
      %2467 = vmatprep.mubr.bf16.mxu0 0
      %2468 = vmatmul.mubr.bf16.gmra.mxu0 %v2386
      %v2469 = vpop.f32.mrf.mxu0
      %v2470 = vadd.f32 0.0, %v2469
      %v2471 = vpop.f32.mrf.mxu0
      %v2472 = vpop.f32.mrf.mxu0
      %v2473 = vadd.f32 0.0, %v2472
      %v2474 = vpop.f32.mrf.mxu0
      %2475 = vmatprep.mubr.bf16.mxu0 0
      %2476 = vmatmul.mubr.bf16.gmra.mxu0 %v2389
      %v2477 = vpop.f32.mrf.mxu0
      %v2478 = vadd.f32 0.0, %v2477
      %v2479 = vpop.f32.mrf.mxu0
      %v2480 = vpop.f32.mrf.mxu0
      %v2481 = vadd.f32 0.0, %v2480
      %v2482 = vpop.f32.mrf.mxu0
      %2483 = vmatprep.mubr.bf16.mxu0 0
      %2484 = vmatmul.mubr.bf16.gmra.mxu0 %v2392
      %v2485 = vpop.f32.mrf.mxu0
      %v2486 = vadd.f32 0.0, %v2485
      %v2487 = vpop.f32.mrf.mxu0
      %v2488 = vpop.f32.mrf.mxu0
      %v2489 = vadd.f32 0.0, %v2488
      %v2490 = vpop.f32.mrf.mxu0
      %2491 = vmatprep.mubr.bf16.mxu0 0
      %2492 = vmatmul.mubr.bf16.gmra.mxu0 %v2395
      %v2493 = vpop.f32.mrf.mxu0
      %v2494 = vadd.f32 0.0, %v2493
      %v2495 = vpop.f32.mrf.mxu0
      %v2496 = vpop.f32.mrf.mxu0
      %v2497 = vadd.f32 0.0, %v2496
      %v2498 = vpop.f32.mrf.mxu0
      %2499 = vmatprep.mubr.bf16.mxu0 0
      %2500 = vmatmul.mubr.bf16.gmra.mxu0 %v2398
      %v2501 = vpop.f32.mrf.mxu0
      %v2502 = vadd.f32 0.0, %v2501
      %v2503 = vpop.f32.mrf.mxu0
      %v2504 = vpop.f32.mrf.mxu0
      %v2505 = vadd.f32 0.0, %v2504
      %v2506 = vpop.f32.mrf.mxu0
      %2507 = vmatprep.mubr.bf16.mxu0 0
      %2508 = vmatmul.mubr.bf16.gmra.mxu0 %v2401
      %v2509 = vpop.f32.mrf.mxu0
      %v2510 = vadd.f32 0.0, %v2509
      %v2511 = vpop.f32.mrf.mxu0
      %v2512 = vpop.f32.mrf.mxu0
      %v2513 = vpop.f32.mrf.mxu0
      %2514 = vdwg.mxu0
      %v2517 = vunpack.c.l.b16 %v2272
      %v2518 = vunpack.c.l.b16 %v2273
      %v2519 = vpack.c.b16 %v2518, %v2517
      %vm2521 = vcmask 130048
      %v2523 = vsel %vm2521, %v2262, 0
      %v2526 = vsel %vm2521, %v2263, 0
      %v2529 = vsel %vm2521, %v2264, 0
      %v2532 = vsel %vm2521, %v2265, 0
      %v2535 = vsel %vm2521, %v2266, 0
      %v2538 = vsel %vm2521, %v2267, 0
      %v2541 = vsel %vm2521, %v2268, 0
      %v2544 = vsel %vm2521, %v2269, 0
      %v2547 = vsel %vm2521, %v2270, 0
      %v2550 = vsel %vm2521, %v2271, 0
      %2552 = vmatprep.subr.bf16.mxu0 0
      %2553 = vmatpush1.bf16.msra.mxu0 0
      %2554 = vmatprep.subr.bf16.mxu0 0
      %2555 = vmatpush1.bf16.msra.mxu0 0
      %2556 = vmatprep.subr.bf16.mxu0 0
      %2557 = vmatpush1.bf16.msra.mxu0 0
      %2558 = vmatprep.subr.bf16.mxu0 0
      %2559 = vmatpush1.bf16.msra.mxu0 0
      %2560 = vmatprep.subr.bf16.mxu0 0
      %2561 = vmatpush1.bf16.msra.mxu0 0
      %2562 = vmatprep.subr.bf16.mxu0 0
      %2563 = vmatpush1.bf16.msra.mxu0 0
      %2564 = vmatprep.subr.bf16.mxu0 0
      %2565 = vmatpush1.bf16.msra.mxu0 0
      %2566 = vmatprep.subr.bf16.mxu0 0
      %2567 = vmatpush1.bf16.msra.mxu0 %v2519
      %2568 = vmatprep.subr.bf16.mxu0 0
      %2569 = vmatpush2.bf16.msra.mxu0 0
      %2570 = vmatprep.subr.bf16.mxu0 0
      %2571 = vmatpush2.bf16.msra.mxu0 0
      %2572 = vmatprep.subr.bf16.mxu0 0
      %2573 = vmatpush2.bf16.msra.mxu0 0
      %2574 = vmatprep.subr.bf16.mxu0 0
      %2575 = vmatpush2.bf16.msra.mxu0 0
      %2576 = vmatprep.subr.bf16.mxu0 0
      %2577 = vmatpush2.bf16.msra.mxu0 0
      %2578 = vmatprep.subr.bf16.mxu0 0
      %2579 = vmatpush2.bf16.msra.mxu0 0
      %2580 = vmatprep.subr.bf16.mxu0 0
      %2581 = vmatpush2.bf16.msra.mxu0 0
      %2582 = vmatprep.subr.bf16.mxu0 0
      %2583 = vmatpush2.bf16.msra.mxu0 0
      %2584 = vmatprep.mubr.bf16.mxu0 0
      %2585 = vmatmul.mubr.bf16.gmra.mxu0 %v2523
      %v2586 = vpop.f32.mrf.mxu0
      %v2587 = vadd.f32 %v2438, %v2586
      %v2588 = vpop.f32.mrf.mxu0
      %v2589 = vpop.f32.mrf.mxu0
      %v2590 = vadd.f32 %v2441, %v2589
      %v2591 = vpop.f32.mrf.mxu0
      %2592 = vmatprep.mubr.bf16.mxu0 0
      %2593 = vmatmul.mubr.bf16.gmra.mxu0 %v2526
      %v2594 = vpop.f32.mrf.mxu0
      %v2595 = vadd.f32 %v2446, %v2594
      %v2596 = vpop.f32.mrf.mxu0
      %v2597 = vpop.f32.mrf.mxu0
      %v2598 = vadd.f32 %v2449, %v2597
      %v2599 = vpop.f32.mrf.mxu0
      %2600 = vmatprep.mubr.bf16.mxu0 0
      %2601 = vmatmul.mubr.bf16.gmra.mxu0 %v2529
      %v2602 = vpop.f32.mrf.mxu0
      %v2603 = vadd.f32 %v2454, %v2602
      %v2604 = vpop.f32.mrf.mxu0
      %v2605 = vpop.f32.mrf.mxu0
      %v2606 = vadd.f32 %v2457, %v2605
      %v2607 = vpop.f32.mrf.mxu0
      %2608 = vmatprep.mubr.bf16.mxu0 0
      %2609 = vmatmul.mubr.bf16.gmra.mxu0 %v2532
      %v2610 = vpop.f32.mrf.mxu0
      %v2611 = vadd.f32 %v2462, %v2610
      %v2612 = vpop.f32.mrf.mxu0
      %v2613 = vpop.f32.mrf.mxu0
      %v2614 = vadd.f32 %v2465, %v2613
      %v2615 = vpop.f32.mrf.mxu0
      %2616 = vmatprep.mubr.bf16.mxu0 0
      %2617 = vmatmul.mubr.bf16.gmra.mxu0 %v2535
      %v2618 = vpop.f32.mrf.mxu0
      %v2619 = vadd.f32 %v2470, %v2618
      %v2620 = vpop.f32.mrf.mxu0
      %v2621 = vpop.f32.mrf.mxu0
      %v2622 = vadd.f32 %v2473, %v2621
      %v2623 = vpop.f32.mrf.mxu0
      %2624 = vmatprep.mubr.bf16.mxu0 0
      %2625 = vmatmul.mubr.bf16.gmra.mxu0 %v2538
      %v2626 = vpop.f32.mrf.mxu0
      %v2627 = vadd.f32 %v2478, %v2626
      %v2628 = vpop.f32.mrf.mxu0
      %v2629 = vpop.f32.mrf.mxu0
      %v2630 = vadd.f32 %v2481, %v2629
      %v2631 = vpop.f32.mrf.mxu0
      %2632 = vmatprep.mubr.bf16.mxu0 0
      %2633 = vmatmul.mubr.bf16.gmra.mxu0 %v2541
      %v2634 = vpop.f32.mrf.mxu0
      %v2635 = vadd.f32 %v2486, %v2634
      %v2636 = vpop.f32.mrf.mxu0
      %v2637 = vpop.f32.mrf.mxu0
      %v2638 = vadd.f32 %v2489, %v2637
      %v2639 = vpop.f32.mrf.mxu0
      %2640 = vmatprep.mubr.bf16.mxu0 0
      %2641 = vmatmul.mubr.bf16.gmra.mxu0 %v2544
      %v2642 = vpop.f32.mrf.mxu0
      %v2643 = vadd.f32 %v2494, %v2642
      %v2644 = vpop.f32.mrf.mxu0
      %v2645 = vpop.f32.mrf.mxu0
      %v2646 = vadd.f32 %v2497, %v2645
      %v2647 = vpop.f32.mrf.mxu0
      %2648 = vmatprep.mubr.bf16.mxu0 0
      %2649 = vmatmul.mubr.bf16.gmra.mxu0 %v2547
      %v2650 = vpop.f32.mrf.mxu0
      %v2651 = vadd.f32 %v2502, %v2650
      %v2652 = vpop.f32.mrf.mxu0
      %v2653 = vpop.f32.mrf.mxu0
      %v2654 = vadd.f32 %v2505, %v2653
      %v2655 = vpop.f32.mrf.mxu0
      %2656 = vmatprep.mubr.bf16.mxu0 0
      %2657 = vmatmul.mubr.bf16.gmra.mxu0 %v2550
      %v2658 = vpop.f32.mrf.mxu0
      %v2659 = vadd.f32 %v2510, %v2658
      %v2660 = vpop.f32.mrf.mxu0
      %v2661 = vpop.f32.mrf.mxu0
      %v2662 = vpop.f32.mrf.mxu0
      %2663 = vdwg.mxu0
      %v2664 = vld [vmem:[%s16] sm:$0x1]
      %v2666 = vlaneseq
      %v2667 = vshrl.u32 %v2666, 7
      %v2668 = vsub.s32 0, %v2667
      %v2669 = vrot.slane %v2664, %v2668
      %v2671 = vadd.f32 %v2587, %v2669
      %v2672 = vadd.f32 %v2590, %v2669
      %v2673 = vadd.f32 %v2595, %v2669
      %v2674 = vadd.f32 %v2598, %v2669
      %v2675 = vadd.f32 %v2603, %v2669
      %v2676 = vadd.f32 %v2606, %v2669
      %v2677 = vadd.f32 %v2611, %v2669
      %v2678 = vadd.f32 %v2614, %v2669
      %v2679 = vadd.f32 %v2619, %v2669
      %v2680 = vadd.f32 %v2622, %v2669
      %v2681 = vadd.f32 %v2627, %v2669
      %v2682 = vadd.f32 %v2630, %v2669
      %v2683 = vadd.f32 %v2635, %v2669
      %v2684 = vadd.f32 %v2638, %v2669
      %v2685 = vadd.f32 %v2643, %v2669
      %v2686 = vadd.f32 %v2646, %v2669
      %v2687 = vadd.f32 %v2651, %v2669
      %v2688 = vadd.f32 %v2654, %v2669
      %v2689 = vadd.f32 %v2659, %v2669
      %v2690 = vmax.f32 %v2671, 0.0
      %v2691 = vmax.f32 %v2672, 0.0
      %v2692 = vmax.f32 %v2673, 0.0
      %v2693 = vmax.f32 %v2674, 0.0
      %v2694 = vmax.f32 %v2675, 0.0
      %v2695 = vmax.f32 %v2676, 0.0
      %v2696 = vmax.f32 %v2677, 0.0
      %v2697 = vmax.f32 %v2678, 0.0
      %v2698 = vmax.f32 %v2679, 0.0
      %v2699 = vmax.f32 %v2680, 0.0
      %v2700 = vmax.f32 %v2681, 0.0
      %v2701 = vmax.f32 %v2682, 0.0
      %v2702 = vmax.f32 %v2683, 0.0
      %v2703 = vmax.f32 %v2684, 0.0
      %v2704 = vmax.f32 %v2685, 0.0
      %v2705 = vmax.f32 %v2686, 0.0
      %v2706 = vmax.f32 %v2687, 0.0
      %v2707 = vmax.f32 %v2688, 0.0
      %v2708 = vmax.f32 %v2689, 0.0
      %v2709 = vpack.c.bf16 %v2691, %v2690
      %v2710 = vpack.c.bf16 %v2693, %v2692
      %v2711 = vpack.c.bf16 %v2695, %v2694
      %v2712 = vpack.c.bf16 %v2697, %v2696
      %v2713 = vpack.c.bf16 %v2699, %v2698
      %v2714 = vpack.c.bf16 %v2701, %v2700
      %v2715 = vpack.c.bf16 %v2703, %v2702
      %v2716 = vpack.c.bf16 %v2705, %v2704
      %v2717 = vpack.c.bf16 %v2707, %v2706
      %v2718 = vpack.c.bf16 %v2708, %v2708
      %v2719 = vld [vmem:[%s17] sm:$0xf]
      %v2720 = vld [vmem:[%s18] sm:$0x1]
      %v2722 = vlaneseq
      %v2723 = vshrl.u32 %v2722, 7
      %v2724 = vsub.s32 0, %v2723
      %v2725 = vrot.slane %v2720, %v2724
      %vm2727 = vcmask 64512
      %v2729 = vsel %vm2727, %v2709, 0
      %v2732 = vsel %vm2727, %v2710, 0
      %v2735 = vsel %vm2727, %v2711, 0
      %v2738 = vsel %vm2727, %v2712, 0
      %v2741 = vsel %vm2727, %v2713, 0
      %v2744 = vsel %vm2727, %v2714, 0
      %v2747 = vsel %vm2727, %v2715, 0
      %v2750 = vsel %vm2727, %v2716, 0
      %v2753 = vsel %vm2727, %v2717, 0
      %v2756 = vsel %vm2727, %v2718, 0
      %vm2758 = vcmask 1043456
      %v2760 = vsel %vm2758, %v2719, 0
      %2762 = vmatprep.subr.bf16.mxu0 0
      %2763 = vmatpush1.bf16.msra.mxu0 0
      %2764 = vmatprep.subr.bf16.mxu0 0
      %2765 = vmatpush1.bf16.msra.mxu0 0
      %2766 = vmatprep.subr.bf16.mxu0 0
      %2767 = vmatpush1.bf16.msra.mxu0 0
      %2768 = vmatprep.subr.bf16.mxu0 0
      %2769 = vmatpush1.bf16.msra.mxu0 0
      %2770 = vmatprep.subr.bf16.mxu0 0
      %2771 = vmatpush1.bf16.msra.mxu0 0
      %2772 = vmatprep.subr.bf16.mxu0 0
      %2773 = vmatpush1.bf16.msra.mxu0 0
      %2774 = vmatprep.subr.bf16.mxu0 0
      %2775 = vmatpush1.bf16.msra.mxu0 0
      %2776 = vmatprep.subr.bf16.mxu0 0
      %2777 = vmatpush1.bf16.msra.mxu0 %v2760
      %2778 = vmatprep.subr.bf16.mxu0 0
      %2779 = vmatpush2.bf16.msra.mxu0 0
      %2780 = vmatprep.subr.bf16.mxu0 0
      %2781 = vmatpush2.bf16.msra.mxu0 0
      %2782 = vmatprep.subr.bf16.mxu0 0
      %2783 = vmatpush2.bf16.msra.mxu0 0
      %2784 = vmatprep.subr.bf16.mxu0 0
      %2785 = vmatpush2.bf16.msra.mxu0 0
      %2786 = vmatprep.subr.bf16.mxu0 0
      %2787 = vmatpush2.bf16.msra.mxu0 0
      %2788 = vmatprep.subr.bf16.mxu0 0
      %2789 = vmatpush2.bf16.msra.mxu0 0
      %2790 = vmatprep.subr.bf16.mxu0 0
      %2791 = vmatpush2.bf16.msra.mxu0 0
      %2792 = vmatprep.subr.bf16.mxu0 0
      %2793 = vmatpush2.bf16.msra.mxu0 0
      %2794 = vmatprep.mubr.bf16.mxu0 0
      %2795 = vmatmul.mubr.bf16.gmra.mxu0 %v2729
      %v2796 = vpop.f32.mrf.mxu0
      %v2797 = vadd.f32 %v2725, %v2796
      %v2798 = vpop.f32.mrf.mxu0
      %v2799 = vpop.f32.mrf.mxu0
      %v2800 = vadd.f32 %v2725, %v2799
      %v2801 = vpop.f32.mrf.mxu0
      %2802 = vmatprep.mubr.bf16.mxu0 0
      %2803 = vmatmul.mubr.bf16.gmra.mxu0 %v2732
      %v2804 = vpop.f32.mrf.mxu0
      %v2805 = vadd.f32 %v2725, %v2804
      %v2806 = vpop.f32.mrf.mxu0
      %v2807 = vpop.f32.mrf.mxu0
      %v2808 = vadd.f32 %v2725, %v2807
      %v2809 = vpop.f32.mrf.mxu0
      %2810 = vmatprep.mubr.bf16.mxu0 0
      %2811 = vmatmul.mubr.bf16.gmra.mxu0 %v2735
      %v2812 = vpop.f32.mrf.mxu0
      %v2813 = vadd.f32 %v2725, %v2812
      %v2814 = vpop.f32.mrf.mxu0
      %v2815 = vpop.f32.mrf.mxu0
      %v2816 = vadd.f32 %v2725, %v2815
      %v2817 = vpop.f32.mrf.mxu0
      %2818 = vmatprep.mubr.bf16.mxu0 0
      %2819 = vmatmul.mubr.bf16.gmra.mxu0 %v2738
      %v2820 = vpop.f32.mrf.mxu0
      %v2821 = vadd.f32 %v2725, %v2820
      %v2822 = vpop.f32.mrf.mxu0
      %v2823 = vpop.f32.mrf.mxu0
      %v2824 = vadd.f32 %v2725, %v2823
      %v2825 = vpop.f32.mrf.mxu0
      %2826 = vmatprep.mubr.bf16.mxu0 0
      %2827 = vmatmul.mubr.bf16.gmra.mxu0 %v2741
      %v2828 = vpop.f32.mrf.mxu0
      %v2829 = vadd.f32 %v2725, %v2828
      %v2830 = vpop.f32.mrf.mxu0
      %v2831 = vpop.f32.mrf.mxu0
      %v2832 = vadd.f32 %v2725, %v2831
      %v2833 = vpop.f32.mrf.mxu0
      %2834 = vmatprep.mubr.bf16.mxu0 0
      %2835 = vmatmul.mubr.bf16.gmra.mxu0 %v2744
      %v2836 = vpop.f32.mrf.mxu0
      %v2837 = vadd.f32 %v2725, %v2836
      %v2838 = vpop.f32.mrf.mxu0
      %v2839 = vpop.f32.mrf.mxu0
      %v2840 = vadd.f32 %v2725, %v2839
      %v2841 = vpop.f32.mrf.mxu0
      %2842 = vmatprep.mubr.bf16.mxu0 0
      %2843 = vmatmul.mubr.bf16.gmra.mxu0 %v2747
      %v2844 = vpop.f32.mrf.mxu0
      %v2845 = vadd.f32 %v2725, %v2844
      %v2846 = vpop.f32.mrf.mxu0
      %v2847 = vpop.f32.mrf.mxu0
      %v2848 = vadd.f32 %v2725, %v2847
      %v2849 = vpop.f32.mrf.mxu0
      %2850 = vmatprep.mubr.bf16.mxu0 0
      %2851 = vmatmul.mubr.bf16.gmra.mxu0 %v2750
      %v2852 = vpop.f32.mrf.mxu0
      %v2853 = vadd.f32 %v2725, %v2852
      %v2854 = vpop.f32.mrf.mxu0
      %v2855 = vpop.f32.mrf.mxu0
      %v2856 = vadd.f32 %v2725, %v2855
      %v2857 = vpop.f32.mrf.mxu0
      %2858 = vmatprep.mubr.bf16.mxu0 0
      %2859 = vmatmul.mubr.bf16.gmra.mxu0 %v2753
      %v2860 = vpop.f32.mrf.mxu0
      %v2861 = vadd.f32 %v2725, %v2860
      %v2862 = vpop.f32.mrf.mxu0
      %v2863 = vpop.f32.mrf.mxu0
      %v2864 = vadd.f32 %v2725, %v2863
      %v2865 = vpop.f32.mrf.mxu0
      %2866 = vmatprep.mubr.bf16.mxu0 0
      %2867 = vmatmul.mubr.bf16.gmra.mxu0 %v2756
      %v2868 = vpop.f32.mrf.mxu0
      %v2869 = vadd.f32 %v2725, %v2868
      %v2870 = vpop.f32.mrf.mxu0
      %v2871 = vpop.f32.mrf.mxu0
      %v2872 = vpop.f32.mrf.mxu0
      %2873 = vdwg.mxu0
      %vm2874 = vcmask 162816
      %2875 = vst.msk [vmem:[%s695] sm:$0xff] %vm2874, %v2797
      %2876 = vst.msk [vmem:[%s695 + $0x8] sm:$0xff] %vm2874, %v2800
      %2877 = vst.msk [vmem:[%s695 + $0x10] sm:$0xff] %vm2874, %v2805
      %2878 = vst.msk [vmem:[%s695 + $0x18] sm:$0xff] %vm2874, %v2808
      %2879 = vst.msk [vmem:[%s695 + $0x20] sm:$0xff] %vm2874, %v2813
      %2880 = vst.msk [vmem:[%s695 + $0x28] sm:$0xff] %vm2874, %v2816
      %2881 = vst.msk [vmem:[%s695 + $0x30] sm:$0xff] %vm2874, %v2821
      %2882 = vst.msk [vmem:[%s695 + $0x38] sm:$0xff] %vm2874, %v2824
      %2883 = vst.msk [vmem:[%s695 + $0x40] sm:$0xff] %vm2874, %v2829
      %2884 = vst.msk [vmem:[%s695 + $0x48] sm:$0xff] %vm2874, %v2832
      %2885 = vst.msk [vmem:[%s695 + $0x50] sm:$0xff] %vm2874, %v2837
      %2886 = vst.msk [vmem:[%s695 + $0x58] sm:$0xff] %vm2874, %v2840
      %2887 = vst.msk [vmem:[%s695 + $0x60] sm:$0xff] %vm2874, %v2845
      %2888 = vst.msk [vmem:[%s695 + $0x68] sm:$0xff] %vm2874, %v2848
      %2889 = vst.msk [vmem:[%s695 + $0x70] sm:$0xff] %vm2874, %v2853
      %2890 = vst.msk [vmem:[%s695 + $0x78] sm:$0xff] %vm2874, %v2856
      %2891 = vst.msk [vmem:[%s695 + $0x80] sm:$0xff] %vm2874, %v2861
      %2892 = vst.msk [vmem:[%s695 + $0x88] sm:$0xff] %vm2874, %v2864
      %2893 = vst.msk [vmem:[%s695 + $0x90] sm:$0xff] %vm2874, %v2869
      %s2894 = smul.u32 19, %s30
      %p2895 = scmp.lt.s32.totalorder %s2894, 37
      %s2896 = scalar_select %p2895, %s2894, 37
      %s2897 = smul.addr %s2896, 8
      %s2898 = scalar_lea.vmem %s19, %s2897
      // Predicated region
      $region97: #{tpu_custom_call.1} parent=95 // pred_check
        %p2899 = pneg %p472
      $region98: #{tpu_custom_call.1} parent=95 // pred_check_branch
        %2901 = sbr.rel (%p2899) target = $region100
      $region99: #{tpu_custom_call.1} parent=95 // pred_region
        %s2902 = smul.u32 19, %s30
      $region100: #{tpu_custom_call.1} parent=95 // pred_fallthru
        _
    $region96: #{tpu_custom_call.1} parent=5 // pred_fallthru
      _
    %p2903 = scmp.le.s32.totalorder 2, %s25
    // Predicated region
    $region101: #{tpu_custom_call.1} parent=5 // pred_check
      %p2904 = pneg %p2903
    $region102: #{tpu_custom_call.1} parent=5 // pred_check_branch
      %2906 = sbr.rel (%p2904) target = $region104
    $region103: #{tpu_custom_call.1} parent=5 // pred_region
      %s2907 = ssub.s32 %s25, 2
      // Predicated region
      $region105: #{tpu_custom_call.1} parent=103 // pred_check
        %p2908 = pneg %p478
      $region106: #{tpu_custom_call.1} parent=103 // pred_check_branch
        %2910 = sbr.rel (%p2908) target = $region108
      $region107: #{tpu_custom_call.1} parent=103 // pred_region
        %s2911 = smul.u32 19, %s31
        %p2912 = scmp.lt.s32.totalorder %s2911, 37
        %s2913 = scalar_select %p2912, %s2911, 37
        %s2914 = smul.addr %s2913, 8
        %s2915 = scalar_lea.vmem %s19, %s2914
      $region108: #{tpu_custom_call.1} parent=103 // pred_fallthru
        _
    $region104: #{tpu_custom_call.1} parent=5 // pred_fallthru
      _
  $region6: #{tpu_custom_call.1} parent=0 // loop_footer
    %s29 = sadd.s32 1, %s25
  $region7: #{tpu_custom_call.1} parent=0 // loop_footer_branch
    %24 = sbr.rel target = $region3
  $region8: #{tpu_custom_call.1} parent=0 // loop_exit
    _

</llo_original>
